<compile_context>
chip_gen: v7x
topology: tpu7x:2x2x1
jax: 0.10.0
libtpu: 0.0.40
codegen_flags: <defaults>
</compile_context>

<pallas_src>
import math
from functools import partial

import jax
import jax.numpy as jnp
from jax.experimental import pallas as pl
from jax.experimental.pallas import tpu as pltpu


def bert_self_attn_kernel(xq_ref, xkv_ref, mask_ref,
                          wq_ref, bq_ref, wkv_ref, bkv_ref,
                          wo_ref, bo_ref, gamma_ref, beta_ref,
                          out_ref, *, num_heads, head_size, hidden):
    """One grid step == one (batch, query-tile) slab."""
    xq = xq_ref[0].astype(jnp.float32)          # (TQ, H) queries + residual
    xkv = xkv_ref[0]                            # (S, H)  keys/values source
    add_mask = mask_ref[0]                      # (1, S)  additive mask (0 / -1e9)

    xq_bf = xq.astype(jnp.bfloat16)
    xkv_bf = xkv.astype(jnp.bfloat16)

    # Projections: Q on the query tile, fused K|V on the full sequence.
    # bf16 operands, f32 accumulation.
    q = jnp.dot(xq_bf, wq_ref[...], preferred_element_type=jnp.float32) + bq_ref[...]
    kv = jnp.dot(xkv_bf, wkv_ref[...], preferred_element_type=jnp.float32) + bkv_ref[...]

    scale = jnp.float32(1.0 / math.sqrt(head_size))
    q_bf = (q * scale).astype(jnp.bfloat16)          # fold 1/sqrt(dh) into Q (f32 math, then cast)
    k_bf = kv[:, :hidden].astype(jnp.bfloat16)       # (S, H)
    v_bf = kv[:, hidden:].astype(jnp.bfloat16)       # (S, H)

    tq = xq.shape[0]
    y = jnp.zeros((tq, hidden), jnp.float32)         # accumulates ctx @ Wo across heads

    for h in range(num_heads):                       # static trip count; chained through y
        sl = slice(h * head_size, (h + 1) * head_size)
        qh = q_bf[:, sl]                             # (TQ, dh)
        kh = k_bf[:, sl]                             # (S, dh)
        vh = v_bf[:, sl]                             # (S, dh)

        # QK^T without materializing kh.T: contract last dim of both operands.
        scores = jax.lax.dot_general(qh, kh, (((1,), (1,)), ((), ())),
                                     preferred_element_type=jnp.float32)   # (TQ, S)
        scores = scores + add_mask                   # broadcast over query rows

        # numerically-stable softmax(dim=-1), f32
        scores = scores - jnp.max(scores, axis=-1, keepdims=True)
        p = jnp.exp(scores)
        p = p * pl.reciprocal(jnp.sum(p, axis=-1, keepdims=True), approx=True)
        # TODO(synk): attention-probs dropout (p=0.3) skipped — eval-mode semantics.

        ctx_h = jnp.dot(p.astype(jnp.bfloat16), vh,
                        preferred_element_type=jnp.float32)                # (TQ, dh)
        # Accumulate this head's slice of the output projection (no concat).
        y = y + jnp.dot(ctx_h.astype(jnp.bfloat16), wo_ref[sl, :],
                        preferred_element_type=jnp.float32)                # (TQ, H)

    # output dense bias + (dropout skipped) + residual + LayerNorm(eps=1e-12)
    # TODO(synk): hidden dropout (p=0.3) skipped — eval-mode semantics.
    y = y + bo_ref[...] + xq
    mu = jnp.mean(y, axis=-1, keepdims=True)
    var = jnp.mean((y - mu) ** 2, axis=-1, keepdims=True)
    yn = (y - mu) * jax.lax.rsqrt(var + jnp.float32(1e-12))
    out_ref[0] = (yn * gamma_ref[...] + beta_ref[...]).astype(out_ref.dtype)


def _pick_query_tile(S):
    for t in (512, 256, 128):
        if S % t == 0:
            return t
    return S


def bert_self_attention_layer(x, attention_mask, params, *, num_heads):
    """x: (B, S, H) float32; attention_mask: (B, S) float32 of {0,1}."""
    B, S, H = x.shape
    assert H % num_heads == 0
    head_size = H // num_heads
    wq, bq, wk, bk, wv, bv, wo, bo, gamma, beta = params

    # Fused K|V weights; MXU operands in bf16 (f32 accumulate inside the kernel).
    wq_bf = wq.astype(jnp.bfloat16)                              # (H, H)
    wkv_bf = jnp.concatenate([wk, wv], axis=1).astype(jnp.bfloat16)  # (H, 2H)
    wo_bf = wo.astype(jnp.bfloat16)                              # (H, H)
    bkv = jnp.concatenate([bk, bv], axis=1)                      # (1, 2H) f32

    # Additive mask precomputed once: 0 where attend, -1e9 where masked
    # (finite large-negative instead of -inf avoids NaN on fully-masked rows).
    add_mask = jnp.where(attention_mask == 0,
                         jnp.float32(-1e9), jnp.float32(0.0)).reshape(B, 1, S)

    tq = _pick_query_tile(S)
    n_q = S // tq

    # Rough resident-set estimate -> explicit VMEM limit (v7x has only 64 MiB).
    per_step_bytes = (
        tq * H * 4 + S * H * 4 + S * 4            # x query tile, x kv tile, mask
        + H * H * 2 + H * 4                       # Wq (bf16), bq
        + H * (2 * H) * 2 + (2 * H) * 4           # Wkv (bf16), bkv
        + H * H * 2 + H * 4 * 3                   # Wo (bf16), bo/gamma/beta
        + tq * H * 4                              # out tile
    )
    vmem_limit = min(max(2 * per_step_bytes + (8 << 20), 16 << 20), 64 << 20)

    kernel = partial(bert_self_attn_kernel,
                     num_heads=num_heads, head_size=head_size, hidden=H)
    const = lambda b, q: (0, 0)

    return pl.pallas_call(
        kernel,
        out_shape=jax.ShapeDtypeStruct((B, S, H), x.dtype),
        grid=(B, n_q),
        in_specs=[
            pl.BlockSpec((1, tq, H), lambda b, q: (b, q, 0)),   # x, query tile (+ residual)
            pl.BlockSpec((1, S, H), lambda b, q: (b, 0, 0)),    # x, full seq (keys/values)
            pl.BlockSpec((1, 1, S), lambda b, q: (b, 0, 0)),    # additive mask
            pl.BlockSpec((H, H), const), pl.BlockSpec((1, H), const),          # Wq, bq
            pl.BlockSpec((H, 2 * H), const), pl.BlockSpec((1, 2 * H), const),  # W[k|v], b[k|v]
            pl.BlockSpec((H, H), const), pl.BlockSpec((1, H), const),          # Wo, bo
            pl.BlockSpec((1, H), const), pl.BlockSpec((1, H), const),          # LN gamma, beta
        ],
        out_specs=pl.BlockSpec((1, tq, H), lambda b, q: (b, q, 0)),
        compiler_params=pltpu.CompilerParams(
            dimension_semantics=("parallel", "parallel"),
            vmem_limit_bytes=int(vmem_limit)),
    )(x, x, add_mask, wq_bf, bq, wkv_bf, bkv, wo_bf, bo, gamma, beta)


def init_params(key, hidden):
    """Deterministic synthetic parameters (shapes from BertConfig/nn.Linear),
    stored as (in, out) so the kernel computes x @ W + b."""
    ks = jax.random.split(key, 8)
    s = 1.0 / math.sqrt(hidden)
    wq = jax.random.normal(ks[0], (hidden, hidden), jnp.float32) * s
    bq = jax.random.normal(ks[1], (1, hidden), jnp.float32) * 0.01
    wk = jax.random.normal(ks[2], (hidden, hidden), jnp.float32) * s
    bk = jax.random.normal(ks[3], (1, hidden), jnp.float32) * 0.01
    wv = jax.random.normal(ks[4], (hidden, hidden), jnp.float32) * s
    bv = jax.random.normal(ks[5], (1, hidden), jnp.float32) * 0.01
    wo = jax.random.normal(ks[6], (hidden, hidden), jnp.float32) * s
    bo = jax.random.normal(ks[7], (1, hidden), jnp.float32) * 0.01
    gamma = jnp.ones((1, hidden), jnp.float32)
    beta = jnp.zeros((1, hidden), jnp.float32)
    return (wq, bq, wk, bk, wv, bv, wo, bo, gamma, beta)


if __name__ == "__main__":
    B, S, H, NUM_HEADS = 2, 8, 32, 4   # hidden_size=32, num_attention_heads=4

    key = jax.random.PRNGKey(0)
    k_x, k_p = jax.random.split(key)
    x = jax.random.normal(k_x, (B, S, H), jnp.float32)

    # Binary key mask (1 = attend, 0 = masked), per batch. Keep >=1 valid key per row.
    attention_mask = jnp.stack([
        jnp.ones((S,), jnp.float32),
        jnp.concatenate([jnp.ones((6,), jnp.float32), jnp.zeros((2,), jnp.float32)]),
    ], axis=0)                                           # (B, S)

    params = init_params(k_p, H)

    out = bert_self_attention_layer(x, attention_mask, params, num_heads=NUM_HEADS)
    jax.block_until_ready(out)
    assert out.shape == (B, S, H)
    print("KERNEL_OK")
</pallas_src>

<mosaic_0001>
module attributes {stable_mosaic.version = 11 : i64} {
  func.func @bert_self_attn_kernel(%arg0: i32, %arg1: i32, %arg2: memref<1x8x32xf32, #tpu.memory_space<vmem>>, %arg3: memref<1x8x32xf32, #tpu.memory_space<vmem>>, %arg4: memref<1x1x8xf32, #tpu.memory_space<vmem>>, %arg5: memref<32x32xbf16, #tpu.memory_space<vmem>>, %arg6: memref<1x32xf32, #tpu.memory_space<vmem>>, %arg7: memref<32x64xbf16, #tpu.memory_space<vmem>>, %arg8: memref<1x64xf32, #tpu.memory_space<vmem>>, %arg9: memref<32x32xbf16, #tpu.memory_space<vmem>>, %arg10: memref<1x32xf32, #tpu.memory_space<vmem>>, %arg11: memref<1x32xf32, #tpu.memory_space<vmem>>, %arg12: memref<1x32xf32, #tpu.memory_space<vmem>>, %arg13: memref<1x8x32xf32, #tpu.memory_space<vmem>>) attributes {dimension_semantics = [#tpu.dimension_semantics<parallel>, #tpu.dimension_semantics<parallel>], iteration_bounds = array<i64: 2, 1>, scalar_prefetch = 0 : i64, scratch_operands = 0 : i64, tpu.core_type = #tpu.core_type<tc>, window_params = [{transform_indices = @transform_0, window_bounds = array<i64: 1, 8, 32>}, {transform_indices = @transform_1, window_bounds = array<i64: 1, 8, 32>}, {transform_indices = @transform_2, window_bounds = array<i64: 1, 1, 8>}, {pipeline_mode = #tpu.pipeline_mode<synchronous>, transform_indices = @transform_3, window_bounds = array<i64: 32, 32>}, {pipeline_mode = #tpu.pipeline_mode<synchronous>, transform_indices = @transform_4, window_bounds = array<i64: 1, 32>}, {pipeline_mode = #tpu.pipeline_mode<synchronous>, transform_indices = @transform_5, window_bounds = array<i64: 32, 64>}, {pipeline_mode = #tpu.pipeline_mode<synchronous>, transform_indices = @transform_6, window_bounds = array<i64: 1, 64>}, {pipeline_mode = #tpu.pipeline_mode<synchronous>, transform_indices = @transform_7, window_bounds = array<i64: 32, 32>}, {pipeline_mode = #tpu.pipeline_mode<synchronous>, transform_indices = @transform_8, window_bounds = array<i64: 1, 32>}, {pipeline_mode = #tpu.pipeline_mode<synchronous>, transform_indices = @transform_9, window_bounds = array<i64: 1, 32>}, {pipeline_mode = #tpu.pipeline_mode<synchronous>, transform_indices = @transform_10, window_bounds = array<i64: 1, 32>}, {transform_indices = @transform_11, window_bounds = array<i64: 1, 8, 32>}]} {
    %c0 = arith.constant 0 : index
    %c0_0 = arith.constant 0 : index
    %c0_1 = arith.constant 0 : index
    %0 = vector.load %arg2[%c0, %c0_0, %c0_1] : memref<1x8x32xf32, #tpu.memory_space<vmem>>, vector<1x8x32xf32>
    %1 = vector.shape_cast %0 : vector<1x8x32xf32> to vector<8x32xf32>
    %c0_2 = arith.constant 0 : index
    %c0_3 = arith.constant 0 : index
    %c0_4 = arith.constant 0 : index
    %2 = vector.load %arg3[%c0_2, %c0_3, %c0_4] : memref<1x8x32xf32, #tpu.memory_space<vmem>>, vector<1x8x32xf32>
    %3 = vector.shape_cast %2 : vector<1x8x32xf32> to vector<8x32xf32>
    %c0_5 = arith.constant 0 : index
    %c0_6 = arith.constant 0 : index
    %c0_7 = arith.constant 0 : index
    %4 = vector.load %arg4[%c0_5, %c0_6, %c0_7] : memref<1x1x8xf32, #tpu.memory_space<vmem>>, vector<1x1x8xf32>
    %5 = vector.shape_cast %4 : vector<1x1x8xf32> to vector<1x8xf32>
    %6 = arith.truncf %1 : vector<8x32xf32> to vector<8x32xbf16>
    %7 = arith.truncf %3 : vector<8x32xf32> to vector<8x32xbf16>
    %c0_8 = arith.constant 0 : index
    %c0_9 = arith.constant 0 : index
    %8 = vector.load %arg5[%c0_8, %c0_9] : memref<32x32xbf16, #tpu.memory_space<vmem>>, vector<32x32xbf16>
    %cst = arith.constant dense<0.000000e+00> : vector<8x32xf32>
    %9 = tpu.matmul %6, %8, %cst {dimension_numbers = #tpu.dot_dimension_numbers<[1], [0], [0], [1], [0, 0, 1, 1], [], []>} : vector<8x32xbf16>, vector<32x32xbf16>, vector<8x32xf32> -> vector<8x32xf32>
    %c0_10 = arith.constant 0 : index
    %c0_11 = arith.constant 0 : index
    %10 = vector.load %arg6[%c0_10, %c0_11] : memref<1x32xf32, #tpu.memory_space<vmem>>, vector<1x32xf32>
    %11 = vector.broadcast %10 : vector<1x32xf32> to vector<8x32xf32>
    %12 = arith.addf %9, %11 : vector<8x32xf32>
    %c0_12 = arith.constant 0 : index
    %c0_13 = arith.constant 0 : index
    %13 = vector.load %arg7[%c0_12, %c0_13] : memref<32x64xbf16, #tpu.memory_space<vmem>>, vector<32x64xbf16>
    %cst_14 = arith.constant dense<0.000000e+00> : vector<8x64xf32>
    %14 = tpu.matmul %7, %13, %cst_14 {dimension_numbers = #tpu.dot_dimension_numbers<[1], [0], [0], [1], [0, 0, 1, 1], [], []>} : vector<8x32xbf16>, vector<32x64xbf16>, vector<8x64xf32> -> vector<8x64xf32>
    %c0_15 = arith.constant 0 : index
    %c0_16 = arith.constant 0 : index
    %15 = vector.load %arg8[%c0_15, %c0_16] : memref<1x64xf32, #tpu.memory_space<vmem>>, vector<1x64xf32>
    %16 = vector.broadcast %15 : vector<1x64xf32> to vector<8x64xf32>
    %17 = arith.addf %14, %16 : vector<8x64xf32>
    %cst_17 = arith.constant 0.353553385 : f32
    %18 = vector.broadcast %cst_17 : f32 to vector<8x32xf32>
    %19 = arith.mulf %12, %18 : vector<8x32xf32>
    %20 = arith.truncf %19 : vector<8x32xf32> to vector<8x32xbf16>
    %21 = vector.extract_strided_slice %17 {offsets = [0, 0], sizes = [8, 32], strides = [1, 1]} : vector<8x64xf32> to vector<8x32xf32>
    %22 = arith.truncf %21 : vector<8x32xf32> to vector<8x32xbf16>
    %23 = vector.extract_strided_slice %17 {offsets = [0, 32], sizes = [8, 32], strides = [1, 1]} : vector<8x64xf32> to vector<8x32xf32>
    %24 = arith.truncf %23 : vector<8x32xf32> to vector<8x32xbf16>
    %cst_18 = arith.constant 0.000000e+00 : f32
    %25 = vector.broadcast %cst_18 : f32 to vector<8x32xf32>
    %26 = vector.extract_strided_slice %20 {offsets = [0, 0], sizes = [8, 8], strides = [1, 1]} : vector<8x32xbf16> to vector<8x8xbf16>
    %27 = vector.extract_strided_slice %22 {offsets = [0, 0], sizes = [8, 8], strides = [1, 1]} : vector<8x32xbf16> to vector<8x8xbf16>
    %28 = vector.extract_strided_slice %24 {offsets = [0, 0], sizes = [8, 8], strides = [1, 1]} : vector<8x32xbf16> to vector<8x8xbf16>
    %cst_19 = arith.constant dense<0.000000e+00> : vector<8x8xf32>
    %29 = tpu.matmul %26, %27, %cst_19 {dimension_numbers = #tpu.dot_dimension_numbers<[1], [1], [0], [0], [0, 0, 1, 0], [], []>} : vector<8x8xbf16>, vector<8x8xbf16>, vector<8x8xf32> -> vector<8x8xf32>
    %30 = vector.broadcast %5 : vector<1x8xf32> to vector<8x8xf32>
    %31 = arith.addf %29, %30 : vector<8x8xf32>
    %cst_20 = arith.constant dense<0xFF800000> : vector<8xf32>
    %32 = vector.multi_reduction <maximumf>, %31, %cst_20 [1] : vector<8x8xf32> to vector<8xf32>
    %33 = vector.shape_cast %32 : vector<8xf32> to vector<8x1xf32>
    %34 = vector.broadcast %33 : vector<8x1xf32> to vector<8x8xf32>
    %35 = arith.subf %31, %34 : vector<8x8xf32>
    %36 = math.exp %35 : vector<8x8xf32>
    %cst_21 = arith.constant dense<0.000000e+00> : vector<8xf32>
    %37 = vector.multi_reduction <add>, %36, %cst_21 [1] : vector<8x8xf32> to vector<8xf32>
    %38 = vector.shape_cast %37 : vector<8xf32> to vector<8x1xf32>
    %39 = tpu.reciprocal %38 {approx = true} : vector<8x1xf32> -> vector<8x1xf32>
    %40 = vector.broadcast %39 : vector<8x1xf32> to vector<8x8xf32>
    %41 = arith.mulf %36, %40 : vector<8x8xf32>
    %42 = arith.truncf %41 : vector<8x8xf32> to vector<8x8xbf16>
    %cst_22 = arith.constant dense<0.000000e+00> : vector<8x8xf32>
    %43 = tpu.matmul %42, %28, %cst_22 {dimension_numbers = #tpu.dot_dimension_numbers<[1], [0], [0], [1], [0, 0, 1, 1], [], []>} : vector<8x8xbf16>, vector<8x8xbf16>, vector<8x8xf32> -> vector<8x8xf32>
    %44 = arith.truncf %43 : vector<8x8xf32> to vector<8x8xbf16>
    %c0_23 = arith.constant 0 : index
    %c0_24 = arith.constant 0 : index
    %45 = vector.load %arg9[%c0_23, %c0_24] : memref<32x32xbf16, #tpu.memory_space<vmem>>, vector<8x32xbf16>
    %cst_25 = arith.constant dense<0.000000e+00> : vector<8x32xf32>
    %46 = tpu.matmul %44, %45, %cst_25 {dimension_numbers = #tpu.dot_dimension_numbers<[1], [0], [0], [1], [0, 0, 1, 1], [], []>} : vector<8x8xbf16>, vector<8x32xbf16>, vector<8x32xf32> -> vector<8x32xf32>
    %47 = arith.addf %25, %46 : vector<8x32xf32>
    %48 = vector.extract_strided_slice %20 {offsets = [0, 8], sizes = [8, 8], strides = [1, 1]} : vector<8x32xbf16> to vector<8x8xbf16>
    %49 = vector.extract_strided_slice %22 {offsets = [0, 8], sizes = [8, 8], strides = [1, 1]} : vector<8x32xbf16> to vector<8x8xbf16>
    %50 = vector.extract_strided_slice %24 {offsets = [0, 8], sizes = [8, 8], strides = [1, 1]} : vector<8x32xbf16> to vector<8x8xbf16>
    %cst_26 = arith.constant dense<0.000000e+00> : vector<8x8xf32>
    %51 = tpu.matmul %48, %49, %cst_26 {dimension_numbers = #tpu.dot_dimension_numbers<[1], [1], [0], [0], [0, 0, 1, 0], [], []>} : vector<8x8xbf16>, vector<8x8xbf16>, vector<8x8xf32> -> vector<8x8xf32>
    %52 = vector.broadcast %5 : vector<1x8xf32> to vector<8x8xf32>
    %53 = arith.addf %51, %52 : vector<8x8xf32>
    %cst_27 = arith.constant dense<0xFF800000> : vector<8xf32>
    %54 = vector.multi_reduction <maximumf>, %53, %cst_27 [1] : vector<8x8xf32> to vector<8xf32>
    %55 = vector.shape_cast %54 : vector<8xf32> to vector<8x1xf32>
    %56 = vector.broadcast %55 : vector<8x1xf32> to vector<8x8xf32>
    %57 = arith.subf %53, %56 : vector<8x8xf32>
    %58 = math.exp %57 : vector<8x8xf32>
    %cst_28 = arith.constant dense<0.000000e+00> : vector<8xf32>
    %59 = vector.multi_reduction <add>, %58, %cst_28 [1] : vector<8x8xf32> to vector<8xf32>
    %60 = vector.shape_cast %59 : vector<8xf32> to vector<8x1xf32>
    %61 = tpu.reciprocal %60 {approx = true} : vector<8x1xf32> -> vector<8x1xf32>
    %62 = vector.broadcast %61 : vector<8x1xf32> to vector<8x8xf32>
    %63 = arith.mulf %58, %62 : vector<8x8xf32>
    %64 = arith.truncf %63 : vector<8x8xf32> to vector<8x8xbf16>
    %cst_29 = arith.constant dense<0.000000e+00> : vector<8x8xf32>
    %65 = tpu.matmul %64, %50, %cst_29 {dimension_numbers = #tpu.dot_dimension_numbers<[1], [0], [0], [1], [0, 0, 1, 1], [], []>} : vector<8x8xbf16>, vector<8x8xbf16>, vector<8x8xf32> -> vector<8x8xf32>
    %66 = arith.truncf %65 : vector<8x8xf32> to vector<8x8xbf16>
    %c8 = arith.constant 8 : index
    %c0_30 = arith.constant 0 : index
    %67 = vector.load %arg9[%c8, %c0_30] : memref<32x32xbf16, #tpu.memory_space<vmem>>, vector<8x32xbf16>
    %cst_31 = arith.constant dense<0.000000e+00> : vector<8x32xf32>
    %68 = tpu.matmul %66, %67, %cst_31 {dimension_numbers = #tpu.dot_dimension_numbers<[1], [0], [0], [1], [0, 0, 1, 1], [], []>} : vector<8x8xbf16>, vector<8x32xbf16>, vector<8x32xf32> -> vector<8x32xf32>
    %69 = arith.addf %47, %68 : vector<8x32xf32>
    %70 = vector.extract_strided_slice %20 {offsets = [0, 16], sizes = [8, 8], strides = [1, 1]} : vector<8x32xbf16> to vector<8x8xbf16>
    %71 = vector.extract_strided_slice %22 {offsets = [0, 16], sizes = [8, 8], strides = [1, 1]} : vector<8x32xbf16> to vector<8x8xbf16>
    %72 = vector.extract_strided_slice %24 {offsets = [0, 16], sizes = [8, 8], strides = [1, 1]} : vector<8x32xbf16> to vector<8x8xbf16>
    %cst_32 = arith.constant dense<0.000000e+00> : vector<8x8xf32>
    %73 = tpu.matmul %70, %71, %cst_32 {dimension_numbers = #tpu.dot_dimension_numbers<[1], [1], [0], [0], [0, 0, 1, 0], [], []>} : vector<8x8xbf16>, vector<8x8xbf16>, vector<8x8xf32> -> vector<8x8xf32>
    %74 = vector.broadcast %5 : vector<1x8xf32> to vector<8x8xf32>
    %75 = arith.addf %73, %74 : vector<8x8xf32>
    %cst_33 = arith.constant dense<0xFF800000> : vector<8xf32>
    %76 = vector.multi_reduction <maximumf>, %75, %cst_33 [1] : vector<8x8xf32> to vector<8xf32>
    %77 = vector.shape_cast %76 : vector<8xf32> to vector<8x1xf32>
    %78 = vector.broadcast %77 : vector<8x1xf32> to vector<8x8xf32>
    %79 = arith.subf %75, %78 : vector<8x8xf32>
    %80 = math.exp %79 : vector<8x8xf32>
    %cst_34 = arith.constant dense<0.000000e+00> : vector<8xf32>
    %81 = vector.multi_reduction <add>, %80, %cst_34 [1] : vector<8x8xf32> to vector<8xf32>
    %82 = vector.shape_cast %81 : vector<8xf32> to vector<8x1xf32>
    %83 = tpu.reciprocal %82 {approx = true} : vector<8x1xf32> -> vector<8x1xf32>
    %84 = vector.broadcast %83 : vector<8x1xf32> to vector<8x8xf32>
    %85 = arith.mulf %80, %84 : vector<8x8xf32>
    %86 = arith.truncf %85 : vector<8x8xf32> to vector<8x8xbf16>
    %cst_35 = arith.constant dense<0.000000e+00> : vector<8x8xf32>
    %87 = tpu.matmul %86, %72, %cst_35 {dimension_numbers = #tpu.dot_dimension_numbers<[1], [0], [0], [1], [0, 0, 1, 1], [], []>} : vector<8x8xbf16>, vector<8x8xbf16>, vector<8x8xf32> -> vector<8x8xf32>
    %88 = arith.truncf %87 : vector<8x8xf32> to vector<8x8xbf16>
    %c16 = arith.constant 16 : index
    %c0_36 = arith.constant 0 : index
    %89 = vector.load %arg9[%c16, %c0_36] : memref<32x32xbf16, #tpu.memory_space<vmem>>, vector<8x32xbf16>
    %cst_37 = arith.constant dense<0.000000e+00> : vector<8x32xf32>
    %90 = tpu.matmul %88, %89, %cst_37 {dimension_numbers = #tpu.dot_dimension_numbers<[1], [0], [0], [1], [0, 0, 1, 1], [], []>} : vector<8x8xbf16>, vector<8x32xbf16>, vector<8x32xf32> -> vector<8x32xf32>
    %91 = arith.addf %69, %90 : vector<8x32xf32>
    %92 = vector.extract_strided_slice %20 {offsets = [0, 24], sizes = [8, 8], strides = [1, 1]} : vector<8x32xbf16> to vector<8x8xbf16>
    %93 = vector.extract_strided_slice %22 {offsets = [0, 24], sizes = [8, 8], strides = [1, 1]} : vector<8x32xbf16> to vector<8x8xbf16>
    %94 = vector.extract_strided_slice %24 {offsets = [0, 24], sizes = [8, 8], strides = [1, 1]} : vector<8x32xbf16> to vector<8x8xbf16>
    %cst_38 = arith.constant dense<0.000000e+00> : vector<8x8xf32>
    %95 = tpu.matmul %92, %93, %cst_38 {dimension_numbers = #tpu.dot_dimension_numbers<[1], [1], [0], [0], [0, 0, 1, 0], [], []>} : vector<8x8xbf16>, vector<8x8xbf16>, vector<8x8xf32> -> vector<8x8xf32>
    %96 = vector.broadcast %5 : vector<1x8xf32> to vector<8x8xf32>
    %97 = arith.addf %95, %96 : vector<8x8xf32>
    %cst_39 = arith.constant dense<0xFF800000> : vector<8xf32>
    %98 = vector.multi_reduction <maximumf>, %97, %cst_39 [1] : vector<8x8xf32> to vector<8xf32>
    %99 = vector.shape_cast %98 : vector<8xf32> to vector<8x1xf32>
    %100 = vector.broadcast %99 : vector<8x1xf32> to vector<8x8xf32>
    %101 = arith.subf %97, %100 : vector<8x8xf32>
    %102 = math.exp %101 : vector<8x8xf32>
    %cst_40 = arith.constant dense<0.000000e+00> : vector<8xf32>
    %103 = vector.multi_reduction <add>, %102, %cst_40 [1] : vector<8x8xf32> to vector<8xf32>
    %104 = vector.shape_cast %103 : vector<8xf32> to vector<8x1xf32>
    %105 = tpu.reciprocal %104 {approx = true} : vector<8x1xf32> -> vector<8x1xf32>
    %106 = vector.broadcast %105 : vector<8x1xf32> to vector<8x8xf32>
    %107 = arith.mulf %102, %106 : vector<8x8xf32>
    %108 = arith.truncf %107 : vector<8x8xf32> to vector<8x8xbf16>
    %cst_41 = arith.constant dense<0.000000e+00> : vector<8x8xf32>
    %109 = tpu.matmul %108, %94, %cst_41 {dimension_numbers = #tpu.dot_dimension_numbers<[1], [0], [0], [1], [0, 0, 1, 1], [], []>} : vector<8x8xbf16>, vector<8x8xbf16>, vector<8x8xf32> -> vector<8x8xf32>
    %110 = arith.truncf %109 : vector<8x8xf32> to vector<8x8xbf16>
    %c24 = arith.constant 24 : index
    %c0_42 = arith.constant 0 : index
    %111 = vector.load %arg9[%c24, %c0_42] : memref<32x32xbf16, #tpu.memory_space<vmem>>, vector<8x32xbf16>
    %cst_43 = arith.constant dense<0.000000e+00> : vector<8x32xf32>
    %112 = tpu.matmul %110, %111, %cst_43 {dimension_numbers = #tpu.dot_dimension_numbers<[1], [0], [0], [1], [0, 0, 1, 1], [], []>} : vector<8x8xbf16>, vector<8x32xbf16>, vector<8x32xf32> -> vector<8x32xf32>
    %113 = arith.addf %91, %112 : vector<8x32xf32>
    %c0_44 = arith.constant 0 : index
    %c0_45 = arith.constant 0 : index
    %114 = vector.load %arg10[%c0_44, %c0_45] : memref<1x32xf32, #tpu.memory_space<vmem>>, vector<1x32xf32>
    %115 = vector.broadcast %114 : vector<1x32xf32> to vector<8x32xf32>
    %116 = arith.addf %113, %115 : vector<8x32xf32>
    %117 = arith.addf %116, %1 : vector<8x32xf32>
    %cst_46 = arith.constant dense<0.000000e+00> : vector<8xf32>
    %118 = vector.multi_reduction <add>, %117, %cst_46 [1] : vector<8x32xf32> to vector<8xf32>
    %119 = vector.shape_cast %118 : vector<8xf32> to vector<8x1xf32>
    %cst_47 = arith.constant 3.200000e+01 : f32
    %120 = vector.broadcast %cst_47 : f32 to vector<8x1xf32>
    %121 = arith.divf %119, %120 : vector<8x1xf32>
    %122 = vector.broadcast %121 : vector<8x1xf32> to vector<8x32xf32>
    %123 = arith.subf %117, %122 : vector<8x32xf32>
    %124 = arith.mulf %123, %123 : vector<8x32xf32>
    %cst_48 = arith.constant dense<0.000000e+00> : vector<8xf32>
    %125 = vector.multi_reduction <add>, %124, %cst_48 [1] : vector<8x32xf32> to vector<8xf32>
    %126 = vector.shape_cast %125 : vector<8xf32> to vector<8x1xf32>
    %cst_49 = arith.constant 3.200000e+01 : f32
    %127 = vector.broadcast %cst_49 : f32 to vector<8x1xf32>
    %128 = arith.divf %126, %127 : vector<8x1xf32>
    %129 = vector.broadcast %121 : vector<8x1xf32> to vector<8x32xf32>
    %130 = arith.subf %117, %129 : vector<8x32xf32>
    %cst_50 = arith.constant 9.99999996E-13 : f32
    %131 = vector.broadcast %cst_50 : f32 to vector<8x1xf32>
    %132 = arith.addf %128, %131 : vector<8x1xf32>
    %133 = math.rsqrt %132 : vector<8x1xf32>
    %134 = vector.broadcast %133 : vector<8x1xf32> to vector<8x32xf32>
    %135 = arith.mulf %130, %134 : vector<8x32xf32>
    %c0_51 = arith.constant 0 : index
    %c0_52 = arith.constant 0 : index
    %136 = vector.load %arg11[%c0_51, %c0_52] : memref<1x32xf32, #tpu.memory_space<vmem>>, vector<1x32xf32>
    %137 = vector.broadcast %136 : vector<1x32xf32> to vector<8x32xf32>
    %138 = arith.mulf %135, %137 : vector<8x32xf32>
    %c0_53 = arith.constant 0 : index
    %c0_54 = arith.constant 0 : index
    %139 = vector.load %arg12[%c0_53, %c0_54] : memref<1x32xf32, #tpu.memory_space<vmem>>, vector<1x32xf32>
    %140 = vector.broadcast %139 : vector<1x32xf32> to vector<8x32xf32>
    %141 = arith.addf %138, %140 : vector<8x32xf32>
    %c0_55 = arith.constant 0 : index
    %c0_56 = arith.constant 0 : index
    %c0_57 = arith.constant 0 : index
    %142 = vector.load %arg13[%c0_55, %c0_56, %c0_57] : memref<1x8x32xf32, #tpu.memory_space<vmem>>, vector<1x8x32xf32>
    %143 = vector.shape_cast %142 : vector<1x8x32xf32> to vector<8x32xf32>
    %144 = vector.shape_cast %141 : vector<8x32xf32> to vector<1x8x32xf32>
    tpu.vector_store %arg13[%c0_55, %c0_56, %c0_57], %144 {strides = array<i32>} : memref<1x8x32xf32, #tpu.memory_space<vmem>>, vector<1x8x32xf32>,
    return
  }
  func.func @transform_0(%arg0: i32, %arg1: i32) -> (i32, i32, i32) {
    %c0_i32 = arith.constant 0 : i32
    %c0_i32_0 = arith.constant 0 : i32
    return %arg0, %arg1, %c0_i32 : i32, i32, i32
  }
  func.func @transform_1(%arg0: i32, %arg1: i32) -> (i32, i32, i32) {
    %c0_i32 = arith.constant 0 : i32
    %c0_i32_0 = arith.constant 0 : i32
    %c0_i32_1 = arith.constant 0 : i32
    return %arg0, %c0_i32, %c0_i32_0 : i32, i32, i32
  }
  func.func @transform_2(%arg0: i32, %arg1: i32) -> (i32, i32, i32) {
    %c0_i32 = arith.constant 0 : i32
    %c0_i32_0 = arith.constant 0 : i32
    %c0_i32_1 = arith.constant 0 : i32
    return %arg0, %c0_i32, %c0_i32_0 : i32, i32, i32
  }
  func.func @transform_3(%arg0: i32, %arg1: i32) -> (i32, i32) {
    %c0_i32 = arith.constant 0 : i32
    %c0_i32_0 = arith.constant 0 : i32
    %c0_i32_1 = arith.constant 0 : i32
    return %c0_i32, %c0_i32_0 : i32, i32
  }
  func.func @transform_4(%arg0: i32, %arg1: i32) -> (i32, i32) {
    %c0_i32 = arith.constant 0 : i32
    %c0_i32_0 = arith.constant 0 : i32
    %c0_i32_1 = arith.constant 0 : i32
    return %c0_i32, %c0_i32_0 : i32, i32
  }
  func.func @transform_5(%arg0: i32, %arg1: i32) -> (i32, i32) {
    %c0_i32 = arith.constant 0 : i32
    %c0_i32_0 = arith.constant 0 : i32
    %c0_i32_1 = arith.constant 0 : i32
    return %c0_i32, %c0_i32_0 : i32, i32
  }
  func.func @transform_6(%arg0: i32, %arg1: i32) -> (i32, i32) {
    %c0_i32 = arith.constant 0 : i32
    %c0_i32_0 = arith.constant 0 : i32
    %c0_i32_1 = arith.constant 0 : i32
    return %c0_i32, %c0_i32_0 : i32, i32
  }
  func.func @transform_7(%arg0: i32, %arg1: i32) -> (i32, i32) {
    %c0_i32 = arith.constant 0 : i32
    %c0_i32_0 = arith.constant 0 : i32
    %c0_i32_1 = arith.constant 0 : i32
    return %c0_i32, %c0_i32_0 : i32, i32
  }
  func.func @transform_8(%arg0: i32, %arg1: i32) -> (i32, i32) {
    %c0_i32 = arith.constant 0 : i32
    %c0_i32_0 = arith.constant 0 : i32
    %c0_i32_1 = arith.constant 0 : i32
    return %c0_i32, %c0_i32_0 : i32, i32
  }
  func.func @transform_9(%arg0: i32, %arg1: i32) -> (i32, i32) {
    %c0_i32 = arith.constant 0 : i32
    %c0_i32_0 = arith.constant 0 : i32
    %c0_i32_1 = arith.constant 0 : i32
    return %c0_i32, %c0_i32_0 : i32, i32
  }
  func.func @transform_10(%arg0: i32, %arg1: i32) -> (i32, i32) {
    %c0_i32 = arith.constant 0 : i32
    %c0_i32_0 = arith.constant 0 : i32
    %c0_i32_1 = arith.constant 0 : i32
    return %c0_i32, %c0_i32_0 : i32, i32
  }
  func.func @transform_11(%arg0: i32, %arg1: i32) -> (i32, i32, i32) {
    %c0_i32 = arith.constant 0 : i32
    %c0_i32_0 = arith.constant 0 : i32
    return %arg0, %arg1, %c0_i32 : i32, i32, i32
  }
}

</mosaic_0001>

<llo_original>
// kernel: tpu_custom_call.1
$region0: #{tpu_custom_call.1}
  #allocation0 [shape = 'u32[]', space=smem, size = 0x4, offset = 0x4, fixed_abs, tag = 'smem constant byte address 0x4 - core index']
  #allocation1 [shape = 'u32[144,128]{1,0:T(1,128)}', space=vmem, size = 0x12000, scoped, tag = 'internal scratch']
  %s0 = inlined_call_operand.hbm [shape: f32[2,8,32], index: 0, kind: input, shape index: {}]
  %s1 = inlined_call_operand.hbm [shape: f32[2,8,32], index: 1, kind: input, shape index: {}]
  %s2 = inlined_call_operand.vmem [shape: f32[2,1,8], index: 2, kind: input, shape index: {}]
  %s3 = inlined_call_operand.hbm [shape: bf16[32,32], index: 3, kind: input, shape index: {}]
  %s4 = inlined_call_operand.hbm [shape: f32[1,32], index: 4, kind: input, shape index: {}]
  %s5 = inlined_call_operand.vmem [shape: bf16[32,64], index: 5, kind: input, shape index: {}]
  %s6 = inlined_call_operand.vmem [shape: f32[1,64], index: 6, kind: input, shape index: {}]
  %s7 = inlined_call_operand.hbm [shape: bf16[32,32], index: 7, kind: input, shape index: {}]
  %s8 = inlined_call_operand.vmem [shape: f32[1,32], index: 8, kind: input, shape index: {}]
  %s9 = inlined_call_operand.vmem [shape: f32[1,32], index: 9, kind: input, shape index: {}]
  %s10 = inlined_call_operand.vmem [shape: f32[1,32], index: 10, kind: input, shape index: {}]
  %s11 = inlined_call_operand.hbm [shape: f32[2,8,32], index: 11, kind: output, shape index: {}]
  %s12 = sld [smem:[#allocation0]]
  $region97: #{tpu_custom_call.1} parent=0
    _
  %s14 = ssub.s32 1, %s12
  %s15 = scalar_select 0, %s14, %s12
  $region1: #{tpu_custom_call.1} parent=0
    #allocation2 [shape = 'u8[8192]{0}', space=vmem, size = 0x2000, scoped, tag = 'input window, operand 0']
    #allocation3 [shape = 's32[2]{0}', space=sflag, size = 0x8, scoped, tag = 'scoped memory for tpu_custom_call.1']
    #allocation4 [shape = 's32[2]{0}', space=sflag, size = 0x8, scoped, tag = 'scoped memory for tpu_custom_call.1']
    #allocation5 [shape = 'u8[8192]{0}', space=vmem, size = 0x2000, scoped, tag = 'input window, operand 1']
    #allocation6 [shape = 's32[2]{0}', space=sflag, size = 0x8, scoped, tag = 'scoped memory for tpu_custom_call.1']
    #allocation7 [shape = 'u8[8192]{0}', space=vmem, size = 0x2000, scoped, tag = 'input window, operand 3, single buffered']
    #allocation8 [shape = 'u8[512]{0}', space=vmem, size = 0x400, scoped, tag = 'input window, operand 4, single buffered']
    #allocation9 [shape = 's32[1]{0}', space=sflag, size = 0x4, scoped, tag = 'scoped memory for tpu_custom_call.1']
    #allocation10 [shape = 'u8[8192]{0}', space=vmem, size = 0x2000, scoped, tag = 'input window, operand 7, single buffered']
    #allocation11 [shape = 'u8[8192]{0}', space=vmem, size = 0x2000, scoped, tag = 'output window, operand 0']
    %16 = vsyncpa [#allocation3], 0
    %s17 = scalar_lea.sflag [#allocation3], 1
    %18 = vsyncpa %s17, 0
    %19 = vsyncpa [#allocation6], 0
    %s20 = scalar_lea.sflag [#allocation6], 1
    %21 = vsyncpa %s20, 0
    %22 = vsyncpa [#allocation9], 0
    %23 = vsyncpa [#allocation4], 0
    %s24 = scalar_lea.sflag [#allocation4], 1
    %25 = vsyncpa %s24, 0
    loop: start=0, step=1, limit=4
    $region2: #{tpu_custom_call.1} parent=1 // loop_pre_header
      _
    $region3: #{tpu_custom_call.1} parent=1 // loop_header
      %s27 = sphi 0, %s31
      %p28 = scmp.ge.s32.totalorder %s27, 4
      %s34 = sphi 0, %s46
      %s35 = sphi 0, %s42
      %s36 = sphi 0, %s34
      %s37 = sphi 0, %s35
      %s38 = sphi 0, %s36
      %s39 = sphi 0, %s37
      %s51 = sphi 0, %s53
      %s54 = sphi 0, %s51
      %s55 = sphi 0, %s54
      %s71 = sphi 0, %s55
      %s77 = sphi 0, %s79
      %s80 = sphi 0, %s77
      %s81 = sphi 0, %s80
      %s97 = sphi 0, %s81
      %s103 = sphi 0, %s105
      %s106 = sphi 0, %s103
      %s107 = sphi 0, %s106
      %s123 = sphi 0, %s107
      %s127 = sphi 0, %s127
      %s129 = sphi 0, %s127
      %s130 = sphi 0, %s129
      %s144 = sphi 0, %s130
      %s148 = sphi 0, %s148
      %s150 = sphi 0, %s148
      %s151 = sphi 0, %s150
      %s165 = sphi 0, %s151
      %s169 = sphi 0, %s169
      %s171 = sphi 0, %s169
      %s172 = sphi 0, %s171
      %s186 = sphi 0, %s172
      %s190 = sphi 0, %s190
      %s192 = sphi 0, %s190
      %s193 = sphi 0, %s192
      %s207 = sphi 0, %s193
      %s211 = sphi 0, %s211
      %s213 = sphi 0, %s211
      %s214 = sphi 0, %s213
      %s228 = sphi 0, %s214
      %s232 = sphi 0, %s232
      %s234 = sphi 0, %s232
      %s235 = sphi 0, %s234
      %s249 = sphi 0, %s235
      %s253 = sphi 0, %s253
      %s255 = sphi 0, %s253
      %s256 = sphi 0, %s255
      %s270 = sphi 0, %s256
      %s274 = sphi 0, %s274
      %s276 = sphi 0, %s274
      %s277 = sphi 0, %s276
      %s291 = sphi 0, %s277
      %s299 = sphi 0, %s301
      %s302 = sphi 0, %s299
      %s303 = sphi 0, %s302
      %s319 = sphi 0, %s303
    $region4: #{tpu_custom_call.1} parent=1 // loop_header_branch
      %30 = sbr.rel (%p28) target = $region8
    $region5: #{tpu_custom_call.1} parent=1 // loop_body
      %s32 = ssub.s32 %s27, 1
      %s33 = ssub.s32 %s27, 2
      %s40 = sadd.s32 1, %s35
      %p41 = scmp.ge.s32.totalorder %s40, 1
      %s42 = scalar_select %p41, 0, %s40
      %s43 = sadd.s32 1, %s34
      %s44 = scalar_select %p41, %s43, %s34
      %p45 = scmp.ge.s32.totalorder %s44, 2
      %s46 = scalar_select %p45, 0, %s44
      %s47 = ssub.s32 %s34, %s46
      %s48 = ssub.s32 %s35, %s42
      %s49 = sor.u32 %s47, %s48
      %p50 = scmp.eq.s32.totalorder %s49, 0
      %s52 = sadd.s32 %s51, 1
      %s53 = scalar_select %p50, %s51, %s52
      %p56 = pneg %p50
      %p57 = scmp.eq.s32.totalorder %s27, 1
      %p58 = por %p56, %p57
      %p59 = scmp.ne.s32.totalorder %s51, %s54
      %p60 = scmp.eq.s32.totalorder %s27, 0
      %p61 = por %p59, %p60
      %p62 = scmp.ne.s32.totalorder %s51, %s54
      %p63 = scmp.eq.s32.totalorder %s32, 1
      %p64 = por %p62, %p63
      %p65 = scmp.ne.s32.totalorder %s54, %s55
      %p66 = scmp.eq.s32.totalorder %s32, 0
      %p67 = por %p65, %p66
      %p68 = scmp.ne.s32.totalorder %s54, %s55
      %p69 = scmp.eq.s32.totalorder %s33, 1
      %p70 = por %p68, %p69
      %p72 = scmp.ne.s32.totalorder %s55, %s71
      %p73 = scmp.eq.s32.totalorder %s33, 0
      %p74 = por %p72, %p73
      %s75 = ssub.s32 %s34, %s46
      %p76 = scmp.eq.s32.totalorder %s75, 0
      %s78 = sadd.s32 %s77, 1
      %s79 = scalar_select %p76, %s77, %s78
      %p82 = pneg %p76
      %p83 = scmp.eq.s32.totalorder %s27, 1
      %p84 = por %p82, %p83
      %p85 = scmp.ne.s32.totalorder %s77, %s80
      %p86 = scmp.eq.s32.totalorder %s27, 0
      %p87 = por %p85, %p86
      %p88 = scmp.ne.s32.totalorder %s77, %s80
      %p89 = scmp.eq.s32.totalorder %s32, 1
      %p90 = por %p88, %p89
      %p91 = scmp.ne.s32.totalorder %s80, %s81
      %p92 = scmp.eq.s32.totalorder %s32, 0
      %p93 = por %p91, %p92
      %p94 = scmp.ne.s32.totalorder %s80, %s81
      %p95 = scmp.eq.s32.totalorder %s33, 1
      %p96 = por %p94, %p95
      %p98 = scmp.ne.s32.totalorder %s81, %s97
      %p99 = scmp.eq.s32.totalorder %s33, 0
      %p100 = por %p98, %p99
      %s101 = ssub.s32 %s34, %s46
      %p102 = scmp.eq.s32.totalorder %s101, 0
      %s104 = sadd.s32 %s103, 1
      %s105 = scalar_select %p102, %s103, %s104
      %p108 = pneg %p102
      %p109 = scmp.eq.s32.totalorder %s27, 1
      %p110 = por %p108, %p109
      %p111 = scmp.ne.s32.totalorder %s103, %s106
      %p112 = scmp.eq.s32.totalorder %s27, 0
      %p113 = por %p111, %p112
      %p114 = scmp.ne.s32.totalorder %s103, %s106
      %p115 = scmp.eq.s32.totalorder %s32, 1
      %p116 = por %p114, %p115
      %p117 = scmp.ne.s32.totalorder %s106, %s107
      %p118 = scmp.eq.s32.totalorder %s32, 0
      %p119 = por %p117, %p118
      %p120 = scmp.ne.s32.totalorder %s106, %s107
      %p121 = scmp.eq.s32.totalorder %s33, 1
      %p122 = por %p120, %p121
      %p124 = scmp.ne.s32.totalorder %s107, %s123
      %p125 = scmp.eq.s32.totalorder %s33, 0
      %p126 = por %p124, %p125
      %s128 = sadd.s32 %s127, 1
      %p131 = scmp.eq.s32.totalorder %s27, 1
      %p132 = scmp.ne.s32.totalorder %s127, %s129
      %p133 = scmp.eq.s32.totalorder %s27, 0
      %p134 = por %p132, %p133
      %p135 = scmp.ne.s32.totalorder %s127, %s129
      %p136 = scmp.eq.s32.totalorder %s32, 1
      %p137 = por %p135, %p136
      %p138 = scmp.ne.s32.totalorder %s129, %s130
      %p139 = scmp.eq.s32.totalorder %s32, 0
      %p140 = por %p138, %p139
      %p141 = scmp.ne.s32.totalorder %s129, %s130
      %p142 = scmp.eq.s32.totalorder %s33, 1
      %p143 = por %p141, %p142
      %p145 = scmp.ne.s32.totalorder %s130, %s144
      %p146 = scmp.eq.s32.totalorder %s33, 0
      %p147 = por %p145, %p146
      %s149 = sadd.s32 %s148, 1
      %p152 = scmp.eq.s32.totalorder %s27, 1
      %p153 = scmp.ne.s32.totalorder %s148, %s150
      %p154 = scmp.eq.s32.totalorder %s27, 0
      %p155 = por %p153, %p154
      %p156 = scmp.ne.s32.totalorder %s148, %s150
      %p157 = scmp.eq.s32.totalorder %s32, 1
      %p158 = por %p156, %p157
      %p159 = scmp.ne.s32.totalorder %s150, %s151
      %p160 = scmp.eq.s32.totalorder %s32, 0
      %p161 = por %p159, %p160
      %p162 = scmp.ne.s32.totalorder %s150, %s151
      %p163 = scmp.eq.s32.totalorder %s33, 1
      %p164 = por %p162, %p163
      %p166 = scmp.ne.s32.totalorder %s151, %s165
      %p167 = scmp.eq.s32.totalorder %s33, 0
      %p168 = por %p166, %p167
      %s170 = sadd.s32 %s169, 1
      %p173 = scmp.eq.s32.totalorder %s27, 1
      %p174 = scmp.ne.s32.totalorder %s169, %s171
      %p175 = scmp.eq.s32.totalorder %s27, 0
      %p176 = por %p174, %p175
      %p177 = scmp.ne.s32.totalorder %s169, %s171
      %p178 = scmp.eq.s32.totalorder %s32, 1
      %p179 = por %p177, %p178
      %p180 = scmp.ne.s32.totalorder %s171, %s172
      %p181 = scmp.eq.s32.totalorder %s32, 0
      %p182 = por %p180, %p181
      %p183 = scmp.ne.s32.totalorder %s171, %s172
      %p184 = scmp.eq.s32.totalorder %s33, 1
      %p185 = por %p183, %p184
      %p187 = scmp.ne.s32.totalorder %s172, %s186
      %p188 = scmp.eq.s32.totalorder %s33, 0
      %p189 = por %p187, %p188
      %s191 = sadd.s32 %s190, 1
      %p194 = scmp.eq.s32.totalorder %s27, 1
      %p195 = scmp.ne.s32.totalorder %s190, %s192
      %p196 = scmp.eq.s32.totalorder %s27, 0
      %p197 = por %p195, %p196
      %p198 = scmp.ne.s32.totalorder %s190, %s192
      %p199 = scmp.eq.s32.totalorder %s32, 1
      %p200 = por %p198, %p199
      %p201 = scmp.ne.s32.totalorder %s192, %s193
      %p202 = scmp.eq.s32.totalorder %s32, 0
      %p203 = por %p201, %p202
      %p204 = scmp.ne.s32.totalorder %s192, %s193
      %p205 = scmp.eq.s32.totalorder %s33, 1
      %p206 = por %p204, %p205
      %p208 = scmp.ne.s32.totalorder %s193, %s207
      %p209 = scmp.eq.s32.totalorder %s33, 0
      %p210 = por %p208, %p209
      %s212 = sadd.s32 %s211, 1
      %p215 = scmp.eq.s32.totalorder %s27, 1
      %p216 = scmp.ne.s32.totalorder %s211, %s213
      %p217 = scmp.eq.s32.totalorder %s27, 0
      %p218 = por %p216, %p217
      %p219 = scmp.ne.s32.totalorder %s211, %s213
      %p220 = scmp.eq.s32.totalorder %s32, 1
      %p221 = por %p219, %p220
      %p222 = scmp.ne.s32.totalorder %s213, %s214
      %p223 = scmp.eq.s32.totalorder %s32, 0
      %p224 = por %p222, %p223
      %p225 = scmp.ne.s32.totalorder %s213, %s214
      %p226 = scmp.eq.s32.totalorder %s33, 1
      %p227 = por %p225, %p226
      %p229 = scmp.ne.s32.totalorder %s214, %s228
      %p230 = scmp.eq.s32.totalorder %s33, 0
      %p231 = por %p229, %p230
      %s233 = sadd.s32 %s232, 1
      %p236 = scmp.eq.s32.totalorder %s27, 1
      %p237 = scmp.ne.s32.totalorder %s232, %s234
      %p238 = scmp.eq.s32.totalorder %s27, 0
      %p239 = por %p237, %p238
      %p240 = scmp.ne.s32.totalorder %s232, %s234
      %p241 = scmp.eq.s32.totalorder %s32, 1
      %p242 = por %p240, %p241
      %p243 = scmp.ne.s32.totalorder %s234, %s235
      %p244 = scmp.eq.s32.totalorder %s32, 0
      %p245 = por %p243, %p244
      %p246 = scmp.ne.s32.totalorder %s234, %s235
      %p247 = scmp.eq.s32.totalorder %s33, 1
      %p248 = por %p246, %p247
      %p250 = scmp.ne.s32.totalorder %s235, %s249
      %p251 = scmp.eq.s32.totalorder %s33, 0
      %p252 = por %p250, %p251
      %s254 = sadd.s32 %s253, 1
      %p257 = scmp.eq.s32.totalorder %s27, 1
      %p258 = scmp.ne.s32.totalorder %s253, %s255
      %p259 = scmp.eq.s32.totalorder %s27, 0
      %p260 = por %p258, %p259
      %p261 = scmp.ne.s32.totalorder %s253, %s255
      %p262 = scmp.eq.s32.totalorder %s32, 1
      %p263 = por %p261, %p262
      %p264 = scmp.ne.s32.totalorder %s255, %s256
      %p265 = scmp.eq.s32.totalorder %s32, 0
      %p266 = por %p264, %p265
      %p267 = scmp.ne.s32.totalorder %s255, %s256
      %p268 = scmp.eq.s32.totalorder %s33, 1
      %p269 = por %p267, %p268
      %p271 = scmp.ne.s32.totalorder %s256, %s270
      %p272 = scmp.eq.s32.totalorder %s33, 0
      %p273 = por %p271, %p272
      %s275 = sadd.s32 %s274, 1
      %p278 = scmp.eq.s32.totalorder %s27, 1
      %p279 = scmp.ne.s32.totalorder %s274, %s276
      %p280 = scmp.eq.s32.totalorder %s27, 0
      %p281 = por %p279, %p280
      %p282 = scmp.ne.s32.totalorder %s274, %s276
      %p283 = scmp.eq.s32.totalorder %s32, 1
      %p284 = por %p282, %p283
      %p285 = scmp.ne.s32.totalorder %s276, %s277
      %p286 = scmp.eq.s32.totalorder %s32, 0
      %p287 = por %p285, %p286
      %p288 = scmp.ne.s32.totalorder %s276, %s277
      %p289 = scmp.eq.s32.totalorder %s33, 1
      %p290 = por %p288, %p289
      %p292 = scmp.ne.s32.totalorder %s277, %s291
      %p293 = scmp.eq.s32.totalorder %s33, 0
      %p294 = por %p292, %p293
      %s295 = ssub.s32 %s34, %s46
      %s296 = ssub.s32 %s35, %s42
      %s297 = sor.u32 %s295, %s296
      %p298 = scmp.eq.s32.totalorder %s297, 0
      %s300 = sadd.s32 %s299, 1
      %s301 = scalar_select %p298, %s299, %s300
      %p304 = pneg %p298
      %p305 = scmp.eq.s32.totalorder %s27, 1
      %p306 = por %p304, %p305
      %p307 = scmp.ne.s32.totalorder %s299, %s302
      %p308 = scmp.eq.s32.totalorder %s27, 0
      %p309 = por %p307, %p308
      %p310 = scmp.ne.s32.totalorder %s299, %s302
      %p311 = scmp.eq.s32.totalorder %s32, 1
      %p312 = por %p310, %p311
      %p313 = scmp.ne.s32.totalorder %s302, %s303
      %p314 = scmp.eq.s32.totalorder %s32, 0
      %p315 = por %p313, %p314
      %p316 = scmp.ne.s32.totalorder %s302, %s303
      %p317 = scmp.eq.s32.totalorder %s33, 1
      %p318 = por %p316, %p317
      %p320 = scmp.ne.s32.totalorder %s303, %s319
      %p321 = scmp.eq.s32.totalorder %s33, 0
      %p322 = por %p320, %p321
      %p323 = scmp.le.s32.totalorder 1, %s27
      %p324 = scmp.lt.s32.totalorder %s27, 3
      %p325 = pnand %p323, %p324
      %p326 = pneg %p325
      // Predicated region
      $region9: #{tpu_custom_call.1} parent=5 // pred_check
        _
      $region10: #{tpu_custom_call.1} parent=5 // pred_check_branch
        %328 = sbr.rel (%p325) target = $region12
      $region11: #{tpu_custom_call.1} parent=5 // pred_region
        %s329 = ssub.s32 %s27, 1
        // Predicated region
        $region13: #{tpu_custom_call.1} parent=11 // pred_check
          %p330 = pneg %p140
        $region14: #{tpu_custom_call.1} parent=11 // pred_check_branch
          %332 = sbr.rel (%p330) target = $region16
        $region15: #{tpu_custom_call.1} parent=11 // pred_region
          %s334 = ssub.s32 256, 256
          %335 = vsyncadd [#allocation6], %s334
          %s336 = sshll.u32 [#allocation7], 4
          %s337 = int_to_ptr.vmem [resolvable:$true] %s336
          %342 = dma.hbm_to_vmem [thread:$0]  %s3, 256, %s337, [#allocation6], 64, 64, 4
        $region16: #{tpu_custom_call.1} parent=11 // pred_fallthru
          _
        // Predicated region
        $region17: #{tpu_custom_call.1} parent=11 // pred_check
          %p343 = pneg %p161
        $region18: #{tpu_custom_call.1} parent=11 // pred_check_branch
          %345 = sbr.rel (%p343) target = $region20
        $region19: #{tpu_custom_call.1} parent=11 // pred_region
          %s347 = ssub.s32 16, 16
          %348 = vsyncadd [#allocation9], %s347
          %s350 = sshll.u32 [#allocation8], 4
          %s351 = int_to_ptr.vmem [resolvable:$true] %s350
          %353 = dma.hbm_to_vmem [thread:$0]  %s4, 16, %s351, [#allocation9]
        $region20: #{tpu_custom_call.1} parent=11 // pred_fallthru
          _
        // Predicated region
        $region21: #{tpu_custom_call.1} parent=11 // pred_check
          %p354 = pneg %p182
        $region22: #{tpu_custom_call.1} parent=11 // pred_check_branch
          %356 = sbr.rel (%p354) target = $region24
        $region23: #{tpu_custom_call.1} parent=11 // pred_region
          _
        $region24: #{tpu_custom_call.1} parent=11 // pred_fallthru
          _
        // Predicated region
        $region25: #{tpu_custom_call.1} parent=11 // pred_check
          %p357 = pneg %p203
        $region26: #{tpu_custom_call.1} parent=11 // pred_check_branch
          %359 = sbr.rel (%p357) target = $region28
        $region27: #{tpu_custom_call.1} parent=11 // pred_region
          _
        $region28: #{tpu_custom_call.1} parent=11 // pred_fallthru
          _
        // Predicated region
        $region29: #{tpu_custom_call.1} parent=11 // pred_check
          %p360 = pneg %p224
        $region30: #{tpu_custom_call.1} parent=11 // pred_check_branch
          %362 = sbr.rel (%p360) target = $region32
        $region31: #{tpu_custom_call.1} parent=11 // pred_region
          %s364 = ssub.s32 256, 256
          %365 = vsyncadd [#allocation9], %s364
          %s366 = sshll.u32 [#allocation10], 4
          %s367 = int_to_ptr.vmem [resolvable:$true] %s366
          %372 = dma.hbm_to_vmem [thread:$0]  %s7, 256, %s367, [#allocation9], 64, 64, 4
        $region32: #{tpu_custom_call.1} parent=11 // pred_fallthru
          _
        // Predicated region
        $region33: #{tpu_custom_call.1} parent=11 // pred_check
          %p373 = pneg %p245
        $region34: #{tpu_custom_call.1} parent=11 // pred_check_branch
          %375 = sbr.rel (%p373) target = $region36
        $region35: #{tpu_custom_call.1} parent=11 // pred_region
          _
        $region36: #{tpu_custom_call.1} parent=11 // pred_fallthru
          _
        // Predicated region
        $region37: #{tpu_custom_call.1} parent=11 // pred_check
          %p376 = pneg %p266
        $region38: #{tpu_custom_call.1} parent=11 // pred_check_branch
          %378 = sbr.rel (%p376) target = $region40
        $region39: #{tpu_custom_call.1} parent=11 // pred_region
          _
        $region40: #{tpu_custom_call.1} parent=11 // pred_fallthru
          _
        // Predicated region
        $region41: #{tpu_custom_call.1} parent=11 // pred_check
          %p379 = pneg %p287
        $region42: #{tpu_custom_call.1} parent=11 // pred_check_branch
          %381 = sbr.rel (%p379) target = $region44
        $region43: #{tpu_custom_call.1} parent=11 // pred_region
          _
        $region44: #{tpu_custom_call.1} parent=11 // pred_fallthru
          _
      $region12: #{tpu_custom_call.1} parent=5 // pred_fallthru
        _
      %p382 = scmp.lt.s32.totalorder %s27, 2
      // Predicated region
      $region45: #{tpu_custom_call.1} parent=5 // pred_check
        %p383 = pneg %p382
      $region46: #{tpu_custom_call.1} parent=5 // pred_check_branch
        %385 = sbr.rel (%p383) target = $region48
      $region47: #{tpu_custom_call.1} parent=5 // pred_region
        // Predicated region
        $region49: #{tpu_custom_call.1} parent=47 // pred_check
          %p386 = pneg %p61
        $region50: #{tpu_custom_call.1} parent=47 // pred_check_branch
          %388 = sbr.rel (%p386) target = $region52
        $region51: #{tpu_custom_call.1} parent=47 // pred_region
          %s389 = sand.u32 %s51, 1
          %s390 = scalar_lea.sflag [#allocation3], %s389
          %s391 = sand.u32 %s51, 1
          %s392 = smul.addr %s391, 8
          %s393 = scalar_lea.vmem [#allocation2], %s392
          %s395 = ssub.s32 128, 128
          %396 = vsyncadd %s390, %s395
          %s397 = sadd.s32 %s35, %s34
          %s398 = smul.addr %s397, 128
          %s399 = scalar_lea.hbm %s0, %s398
          %s401 = sshll.u32 %s393, 4
          %s402 = int_to_ptr.vmem [resolvable:$true] %s401
          %404 = dma.hbm_to_vmem [thread:$0]  %s399, 128, %s402, %s390
        $region52: #{tpu_custom_call.1} parent=47 // pred_fallthru
          _
        // Predicated region
        $region53: #{tpu_custom_call.1} parent=47 // pred_check
          %p405 = pneg %p87
        $region54: #{tpu_custom_call.1} parent=47 // pred_check_branch
          %407 = sbr.rel (%p405) target = $region56
        $region55: #{tpu_custom_call.1} parent=47 // pred_region
          %s408 = sand.u32 %s27, 1
          %s409 = scalar_lea.sflag [#allocation6], %s408
          %s410 = sand.u32 %s77, 1
          %s411 = smul.addr %s410, 8
          %s412 = scalar_lea.vmem [#allocation5], %s411
          %s414 = ssub.s32 128, 128
          %415 = vsyncadd %s409, %s414
          %s416 = smul.addr %s34, 128
          %s417 = scalar_lea.hbm %s1, %s416
          %s419 = sshll.u32 %s412, 4
          %s420 = int_to_ptr.vmem [resolvable:$true] %s419
          %422 = dma.hbm_to_vmem [thread:$0]  %s417, 128, %s420, %s409
        $region56: #{tpu_custom_call.1} parent=47 // pred_fallthru
          _
        // Predicated region
        $region57: #{tpu_custom_call.1} parent=47 // pred_check
          %p423 = pneg %p113
        $region58: #{tpu_custom_call.1} parent=47 // pred_check_branch
          %425 = sbr.rel (%p423) target = $region60
        $region59: #{tpu_custom_call.1} parent=47 // pred_region
          %p426 = scmp.lt.s32.totalorder %s34, 1
          %s427 = scalar_select %p426, %s34, 1
          %s428 = scalar_lea.vmem %s2, %s427
        $region60: #{tpu_custom_call.1} parent=47 // pred_fallthru
          _
      $region48: #{tpu_custom_call.1} parent=5 // pred_fallthru
        _
      %p429 = scmp.le.s32.totalorder 1, %s27
      %p430 = scmp.lt.s32.totalorder %s27, 3
      %p431 = pnand %p429, %p430
      %p432 = pneg %p431
      // Predicated region
      $region61: #{tpu_custom_call.1} parent=5 // pred_check
        _
      $region62: #{tpu_custom_call.1} parent=5 // pred_check_branch
        %434 = sbr.rel (%p431) target = $region64
      $region63: #{tpu_custom_call.1} parent=5 // pred_region
        %s435 = ssub.s32 %s27, 1
        %s436 = sand.u32 %s54, 1
        %s437 = scalar_lea.sflag [#allocation3], %s436
        %s438 = sand.u32 %s54, 1
        %s439 = smul.addr %s438, 8
        %s440 = scalar_lea.vmem [#allocation2], %s439
        // Predicated region
        $region65: #{tpu_custom_call.1} parent=63 // pred_check
          %p441 = pneg %p67
        $region66: #{tpu_custom_call.1} parent=63 // pred_check_branch
          %443 = sbr.rel (%p441) target = $region68
        $region67: #{tpu_custom_call.1} parent=63 // pred_region
          %444 = dma.done %s437, 128
        $region68: #{tpu_custom_call.1} parent=63 // pred_fallthru
          _
        %s445 = sand.u32 %s32, 1
        %s446 = scalar_lea.sflag [#allocation6], %s445
        %s447 = sand.u32 %s80, 1
        %s448 = smul.addr %s447, 8
        %s449 = scalar_lea.vmem [#allocation5], %s448
        // Predicated region
        $region69: #{tpu_custom_call.1} parent=63 // pred_check
          %p450 = pneg %p93
        $region70: #{tpu_custom_call.1} parent=63 // pred_check_branch
          %452 = sbr.rel (%p450) target = $region72
        $region71: #{tpu_custom_call.1} parent=63 // pred_region
          %453 = dma.done %s446, 128
        $region72: #{tpu_custom_call.1} parent=63 // pred_fallthru
          _
        // Predicated region
        $region73: #{tpu_custom_call.1} parent=63 // pred_check
          %p454 = pneg %p140
        $region74: #{tpu_custom_call.1} parent=63 // pred_check_branch
          %456 = sbr.rel (%p454) target = $region76
        $region75: #{tpu_custom_call.1} parent=63 // pred_region
          %457 = dma.done [#allocation6], 256
        $region76: #{tpu_custom_call.1} parent=63 // pred_fallthru
          _
        // Predicated region
        $region77: #{tpu_custom_call.1} parent=63 // pred_check
          %p458 = pneg %p161
        $region78: #{tpu_custom_call.1} parent=63 // pred_check_branch
          %460 = sbr.rel (%p458) target = $region80
        $region79: #{tpu_custom_call.1} parent=63 // pred_region
          %461 = dma.done [#allocation9], 16
        $region80: #{tpu_custom_call.1} parent=63 // pred_fallthru
          _
        // Predicated region
        $region81: #{tpu_custom_call.1} parent=63 // pred_check
          %p462 = pneg %p224
        $region82: #{tpu_custom_call.1} parent=63 // pred_check_branch
          %464 = sbr.rel (%p462) target = $region84
        $region83: #{tpu_custom_call.1} parent=63 // pred_region
          %465 = dma.done [#allocation9], 256
        $region84: #{tpu_custom_call.1} parent=63 // pred_fallthru
          _
        %s466 = sand.u32 %s54, 1
        %s467 = scalar_lea.sflag [#allocation3], %s466
        %s468 = sand.u32 %s54, 1
        %s469 = smul.addr %s468, 8
        %s470 = scalar_lea.vmem [#allocation2], %s469
        %p471 = pneg %p67
        %p472 = pneg %p64
        %s473 = sand.u32 %s32, 1
        %s474 = scalar_lea.sflag [#allocation6], %s473
        %s475 = sand.u32 %s80, 1
        %s476 = smul.addr %s475, 8
        %s477 = scalar_lea.vmem [#allocation5], %s476
        %p478 = pneg %p93
        %p479 = pneg %p90
        %p480 = scmp.lt.s32.totalorder %s36, 1
        %s481 = scalar_select %p480, %s36, 1
        %s482 = scalar_lea.vmem %s2, %s481
        %p483 = pneg %p119
        %p484 = pneg %p116
        %p485 = pneg %p140
        %p486 = pneg %p137
        %p487 = pneg %p161
        %p488 = pneg %p158
        %p489 = pneg %p182
        %p490 = pneg %p179
        %p491 = pneg %p203
        %p492 = pneg %p200
        %p493 = pneg %p224
        %p494 = pneg %p221
        %p495 = pneg %p245
        %p496 = pneg %p242
        %p497 = pneg %p266
        %p498 = pneg %p263
        %p499 = pneg %p287
        %p500 = pneg %p284
        %p501 = pneg %p315
        %p502 = pneg %p312
        %s503 = sand.u32 %s302, 1
        %s504 = scalar_lea.sflag [#allocation4], %s503
        %s505 = sand.u32 %s302, 1
        %s506 = smul.addr %s505, 8
        %s507 = scalar_lea.vmem [#allocation11], %s506
        %p508 = scmp.lt.s32.totalorder %s36, 1
        %s509 = scalar_select %p508, %s36, 1
        %s510 = scalar_lea.vmem %s2, %s509
        %v512 = vld [vmem:[%s440] sm:$0xff]
        %v513 = vld [vmem:[%s449] sm:$0xff]
        %v514 = vld [vmem:[%s510] sm:$0x1]
        %v515 = vpack.c.bf16 %v512, %v512
        %v516 = vpack.c.bf16 %v513, %v513
        %v517 = vld [vmem:[#allocation7] sm:$0xf]
        %v518 = vld [vmem:[#allocation7 + $0x4] sm:$0xf]
        %v519 = vld [vmem:[#allocation7 + $0x8] sm:$0xf]
        %v520 = vld [vmem:[#allocation7 + $0xc] sm:$0xf]
        %v521 = vld [vmem:[#allocation8] sm:$0x1]
        %v523 = vlaneseq
        %v524 = vshrl.u32 %v523, 7
        %v525 = vsub.s32 0, %v524
        %v526 = vrot.slane %v521, %v525
        %v532 = vunpack.c.l.b16 %v517
        %v533 = vunpack.c.l.b16 %v518
        %v534 = vunpack.c.l.b16 %v519
        %v535 = vunpack.c.l.b16 %v520
        %v536 = vpack.c.b16 %v533, %v532
        %v537 = vpack.c.b16 %v535, %v534
        %vm540 = vcmask 261120
        %v542 = vsel %vm540, %v515, 0
        %544 = vmatprep.subr.bf16.mxu0 0
        %545 = vmatpush1.bf16.msra.mxu0 %v536
        %546 = vmatprep.subr.bf16.mxu0 0
        %547 = vmatpush1.bf16.msra.mxu0 %v537
        %548 = vmatprep.subr.bf16.mxu0 0
        %549 = vmatpush1.bf16.msra.mxu0 0
        %550 = vmatprep.subr.bf16.mxu0 0
        %551 = vmatpush1.bf16.msra.mxu0 0
        %552 = vmatprep.subr.bf16.mxu0 0
        %553 = vmatpush1.bf16.msra.mxu0 0
        %554 = vmatprep.subr.bf16.mxu0 0
        %555 = vmatpush1.bf16.msra.mxu0 0
        %556 = vmatprep.subr.bf16.mxu0 0
        %557 = vmatpush1.bf16.msra.mxu0 0
        %558 = vmatprep.subr.bf16.mxu0 0
        %559 = vmatpush1.bf16.msra.mxu0 0
        %560 = vmatprep.subr.bf16.mxu0 0
        %561 = vmatpush1.bf16.msra.mxu0 0
        %562 = vmatprep.subr.bf16.mxu0 0
        %563 = vmatpush1.bf16.msra.mxu0 0
        %564 = vmatprep.subr.bf16.mxu0 0
        %565 = vmatpush1.bf16.msra.mxu0 0
        %566 = vmatprep.subr.bf16.mxu0 0
        %567 = vmatpush1.bf16.msra.mxu0 0
        %568 = vmatprep.subr.bf16.mxu0 0
        %569 = vmatpush1.bf16.msra.mxu0 0
        %570 = vmatprep.subr.bf16.mxu0 0
        %571 = vmatpush1.bf16.msra.mxu0 0
        %572 = vmatprep.subr.bf16.mxu0 0
        %573 = vmatpush1.bf16.msra.mxu0 0
        %574 = vmatprep.subr.bf16.mxu0 0
        %575 = vmatpush1.bf16.msra.mxu0 0
        %576 = vmatprep.mubr.bf16.mxu0 0
        %577 = vmatmul.mubr.bf16.gmra.mrb[0].mxu0 %v542
        %v578 = vpop.f32.mrb[0].mxu0
        %v579 = vadd.f32 %v526, %v578
        %v580 = vpop.f32.mrb[0].mxu0
        %v581 = vpop.f32.mrb[0].mxu0
        %v582 = vpop.f32.mrb[0].mxu0
        %583 = vdwg.mxu0
        %v584 = vld [vmem:[%s5] sm:$0xf]
        %v585 = vld [vmem:[%s5 + $0x4] sm:$0xf]
        %v586 = vld [vmem:[%s5 + $0x8] sm:$0xf]
        %v587 = vld [vmem:[%s5 + $0xc] sm:$0xf]
        %v588 = vld [vmem:[%s6] sm:$0x1]
        %v590 = vlaneseq
        %v591 = vshrl.u32 %v590, 7
        %v592 = vsub.s32 0, %v591
        %v593 = vrot.slane %v588, %v592
        %v599 = vunpack.c.l.b16 %v584
        %v600 = vunpack.c.l.b16 %v585
        %v601 = vunpack.c.l.b16 %v586
        %v602 = vunpack.c.l.b16 %v587
        %v603 = vpack.c.b16 %v600, %v599
        %v604 = vpack.c.b16 %v602, %v601
        %v608 = vsel %vm540, %v516, 0
        %610 = vmatprep.subr.bf16.mxu0 0
        %611 = vmatpush1.bf16.msra.mxu0 %v603
        %612 = vmatprep.subr.bf16.mxu0 0
        %613 = vmatpush1.bf16.msra.mxu0 %v604
        %614 = vmatprep.subr.bf16.mxu0 0
        %615 = vmatpush1.bf16.msra.mxu0 0
        %616 = vmatprep.subr.bf16.mxu0 0
        %617 = vmatpush1.bf16.msra.mxu0 0
        %618 = vmatprep.subr.bf16.mxu0 0
        %619 = vmatpush1.bf16.msra.mxu0 0
        %620 = vmatprep.subr.bf16.mxu0 0
        %621 = vmatpush1.bf16.msra.mxu0 0
        %622 = vmatprep.subr.bf16.mxu0 0
        %623 = vmatpush1.bf16.msra.mxu0 0
        %624 = vmatprep.subr.bf16.mxu0 0
        %625 = vmatpush1.bf16.msra.mxu0 0
        %626 = vmatprep.subr.bf16.mxu0 0
        %627 = vmatpush1.bf16.msra.mxu0 0
        %628 = vmatprep.subr.bf16.mxu0 0
        %629 = vmatpush1.bf16.msra.mxu0 0
        %630 = vmatprep.subr.bf16.mxu0 0
        %631 = vmatpush1.bf16.msra.mxu0 0
        %632 = vmatprep.subr.bf16.mxu0 0
        %633 = vmatpush1.bf16.msra.mxu0 0
        %634 = vmatprep.subr.bf16.mxu0 0
        %635 = vmatpush1.bf16.msra.mxu0 0
        %636 = vmatprep.subr.bf16.mxu0 0
        %637 = vmatpush1.bf16.msra.mxu0 0
        %638 = vmatprep.subr.bf16.mxu0 0
        %639 = vmatpush1.bf16.msra.mxu0 0
        %640 = vmatprep.subr.bf16.mxu0 0
        %641 = vmatpush1.bf16.msra.mxu0 0
        %642 = vmatprep.mubr.bf16.mxu0 0
        %643 = vmatmul.mubr.bf16.gmra.mrb[0].mxu0 %v608
        %v644 = vpop.f32.mrb[0].mxu0
        %v645 = vadd.f32 %v593, %v644
        %v646 = vpop.f32.mrb[0].mxu0
        %v647 = vpop.f32.mrb[0].mxu0
        %v648 = vpop.f32.mrb[0].mxu0
        %649 = vdwg.mxu0
        %v650 = vmul.f32 %v579, 0.35355338
        %v651 = vpack.c.bf16 %v650, %v650
        %v652 = vpack.c.bf16 %v645, %v645
        %v654 = vlaneseq
        %v655 = vshrl.u32 %v654, 7
        %v656 = vsub.s32 0, %v655
        %v657 = vrot.slane %v514, %v656
        %vm659 = vcmask 64512
        %v661 = vsel %vm659, %v651, 0
        %v664 = vsel %vm659, %v652, 0
        %666 = vmatprep.subr.bf16.mxu0 0
        %667 = vmatpush1.bf16.xpose.msra.mxu0 %v664
        %668 = vmatprep.subr.bf16.mxu0 0
        %669 = vmatpush1.bf16.xpose.msra.mxu0 0
        %670 = vmatprep.subr.bf16.mxu0 0
        %671 = vmatpush1.bf16.xpose.msra.mxu0 0
        %672 = vmatprep.subr.bf16.mxu0 0
        %673 = vmatpush1.bf16.xpose.msra.mxu0 0
        %674 = vmatprep.subr.bf16.mxu0 0
        %675 = vmatpush1.bf16.xpose.msra.mxu0 0
        %676 = vmatprep.subr.bf16.mxu0 0
        %677 = vmatpush1.bf16.xpose.msra.mxu0 0
        %678 = vmatprep.subr.bf16.mxu0 0
        %679 = vmatpush1.bf16.xpose.msra.mxu0 0
        %680 = vmatprep.subr.bf16.mxu0 0
        %681 = vmatpush1.bf16.xpose.msra.mxu0 0
        %682 = vmatprep.subr.bf16.mxu0 0
        %683 = vmatpush1.bf16.xpose.msra.mxu0 0
        %684 = vmatprep.subr.bf16.mxu0 0
        %685 = vmatpush1.bf16.xpose.msra.mxu0 0
        %686 = vmatprep.subr.bf16.mxu0 0
        %687 = vmatpush1.bf16.xpose.msra.mxu0 0
        %688 = vmatprep.subr.bf16.mxu0 0
        %689 = vmatpush1.bf16.xpose.msra.mxu0 0
        %690 = vmatprep.subr.bf16.mxu0 0
        %691 = vmatpush1.bf16.xpose.msra.mxu0 0
        %692 = vmatprep.subr.bf16.mxu0 0
        %693 = vmatpush1.bf16.xpose.msra.mxu0 0
        %694 = vmatprep.subr.bf16.mxu0 0
        %695 = vmatpush1.bf16.xpose.msra.mxu0 0
        %696 = vmatprep.subr.bf16.mxu0 0
        %697 = vmatpush1.bf16.xpose.msra.mxu0 0
        %698 = vmatprep.mubr.bf16.mxu0 0
        %699 = vmatmul.mubr.bf16.gmra.mrb[0].mxu0 %v661
        %v700 = vpop.f32.mrb[0].mxu0
        %v701 = vadd.f32 %v657, %v700
        %v702 = vpop.f32.mrb[0].mxu0
        %v703 = vpop.f32.mrb[0].mxu0
        %v704 = vpop.f32.mrb[0].mxu0
        %705 = vdwg.mxu0
        %v706 = vsel %vm659, %v701, -inf
        %707 = vmax.xlane.f32.xlu0 %v706
        %v708 = vpop.xlane.xlu0 %707
        %v709 = vsub.f32 %v701, %v708
        %v710 = vmul.f32 %v709, 1.442695
        %v711 = vpow.pop %v710
        %v712 = vsel %vm659, %v711, 0.0
        %713 = vadd.xlane.f32.xlu0 %v712
        %v714 = vpop.xlane.xlu0 %713
        %v715 = vrcp.pop %v714
        %v716 = vmul.f32 %v711, %v715
        %v717 = vpack.c.bf16 %v716, %v716
        %719 = vrot.lane.b32.xlu0 %v652, 96
        %v720 = vpop.permute.xlu0 %719
        %v722 = vsel %vm659, %v717, 0
        %vm724 = vcmask 1043456
        %v726 = vsel %vm724, %v720, 0
        %728 = vmatprep.subr.bf16.mxu0 0
        %729 = vmatpush1.bf16.msra.mxu0 %v726
        %730 = vmatprep.subr.bf16.mxu0 0
        %731 = vmatpush1.bf16.msra.mxu0 0
        %732 = vmatprep.subr.bf16.mxu0 0
        %733 = vmatpush1.bf16.msra.mxu0 0
        %734 = vmatprep.subr.bf16.mxu0 0
        %735 = vmatpush1.bf16.msra.mxu0 0
        %736 = vmatprep.subr.bf16.mxu0 0
        %737 = vmatpush1.bf16.msra.mxu0 0
        %738 = vmatprep.subr.bf16.mxu0 0
        %739 = vmatpush1.bf16.msra.mxu0 0
        %740 = vmatprep.subr.bf16.mxu0 0
        %741 = vmatpush1.bf16.msra.mxu0 0
        %742 = vmatprep.subr.bf16.mxu0 0
        %743 = vmatpush1.bf16.msra.mxu0 0
        %744 = vmatprep.subr.bf16.mxu0 0
        %745 = vmatpush1.bf16.msra.mxu0 0
        %746 = vmatprep.subr.bf16.mxu0 0
        %747 = vmatpush1.bf16.msra.mxu0 0
        %748 = vmatprep.subr.bf16.mxu0 0
        %749 = vmatpush1.bf16.msra.mxu0 0
        %750 = vmatprep.subr.bf16.mxu0 0
        %751 = vmatpush1.bf16.msra.mxu0 0
        %752 = vmatprep.subr.bf16.mxu0 0
        %753 = vmatpush1.bf16.msra.mxu0 0
        %754 = vmatprep.subr.bf16.mxu0 0
        %755 = vmatpush1.bf16.msra.mxu0 0
        %756 = vmatprep.subr.bf16.mxu0 0
        %757 = vmatpush1.bf16.msra.mxu0 0
        %758 = vmatprep.subr.bf16.mxu0 0
        %759 = vmatpush1.bf16.msra.mxu0 0
        %760 = vmatprep.mubr.bf16.mxu0 0
        %761 = vmatmul.mubr.bf16.gmra.mrb[0].mxu0 %v722
        %v762 = vpop.f32.mrb[0].mxu0
        %v763 = vadd.f32 0.0, %v762
        %v764 = vpop.f32.mrb[0].mxu0
        %v765 = vpop.f32.mrb[0].mxu0
        %v766 = vpop.f32.mrb[0].mxu0
        %767 = vdwg.mxu0
        %v768 = vpack.c.bf16 %v763, %v763
        %v769 = vld [vmem:[#allocation10] sm:$0xf]
        %771 = vrot.lane.b32.xlu0 %v651, 120
        %v772 = vpop.permute.xlu0 %771
        %773 = vrot.lane.b32.xlu0 %v652, 120
        %v774 = vpop.permute.xlu0 %773
        %v776 = vsel %vm659, %v772, 0
        %v779 = vsel %vm659, %v774, 0
        %781 = vmatprep.subr.bf16.mxu0 0
        %782 = vmatpush1.bf16.xpose.msra.mxu0 %v779
        %783 = vmatprep.subr.bf16.mxu0 0
        %784 = vmatpush1.bf16.xpose.msra.mxu0 0
        %785 = vmatprep.subr.bf16.mxu0 0
        %786 = vmatpush1.bf16.xpose.msra.mxu0 0
        %787 = vmatprep.subr.bf16.mxu0 0
        %788 = vmatpush1.bf16.xpose.msra.mxu0 0
        %789 = vmatprep.subr.bf16.mxu0 0
        %790 = vmatpush1.bf16.xpose.msra.mxu0 0
        %791 = vmatprep.subr.bf16.mxu0 0
        %792 = vmatpush1.bf16.xpose.msra.mxu0 0
        %793 = vmatprep.subr.bf16.mxu0 0
        %794 = vmatpush1.bf16.xpose.msra.mxu0 0
        %795 = vmatprep.subr.bf16.mxu0 0
        %796 = vmatpush1.bf16.xpose.msra.mxu0 0
        %797 = vmatprep.subr.bf16.mxu0 0
        %798 = vmatpush1.bf16.xpose.msra.mxu0 0
        %799 = vmatprep.subr.bf16.mxu0 0
        %800 = vmatpush1.bf16.xpose.msra.mxu0 0
        %801 = vmatprep.subr.bf16.mxu0 0
        %802 = vmatpush1.bf16.xpose.msra.mxu0 0
        %803 = vmatprep.subr.bf16.mxu0 0
        %804 = vmatpush1.bf16.xpose.msra.mxu0 0
        %805 = vmatprep.subr.bf16.mxu0 0
        %806 = vmatpush1.bf16.xpose.msra.mxu0 0
        %807 = vmatprep.subr.bf16.mxu0 0
        %808 = vmatpush1.bf16.xpose.msra.mxu0 0
        %809 = vmatprep.subr.bf16.mxu0 0
        %810 = vmatpush1.bf16.xpose.msra.mxu0 0
        %811 = vmatprep.subr.bf16.mxu0 0
        %812 = vmatpush1.bf16.xpose.msra.mxu0 0
        %813 = vmatprep.mubr.bf16.mxu0 0
        %814 = vmatmul.mubr.bf16.gmra.mrb[0].mxu0 %v776
        %v815 = vpop.f32.mrb[0].mxu0
        %v816 = vadd.f32 %v657, %v815
        %v817 = vpop.f32.mrb[0].mxu0
        %v818 = vpop.f32.mrb[0].mxu0
        %v819 = vpop.f32.mrb[0].mxu0
        %820 = vdwg.mxu0
        %v821 = vsel %vm659, %v816, -inf
        %822 = vmax.xlane.f32.xlu0 %v821
        %v823 = vpop.xlane.xlu0 %822
        %v824 = vsub.f32 %v816, %v823
        %v825 = vmul.f32 %v824, 1.442695
        %v826 = vpow.pop %v825
        %v827 = vsel %vm659, %v826, 0.0
        %828 = vadd.xlane.f32.xlu0 %v827
        %v829 = vpop.xlane.xlu0 %828
        %v830 = vrcp.pop %v829
        %v831 = vmul.f32 %v826, %v830
        %v832 = vpack.c.bf16 %v831, %v831
        %833 = vrot.lane.b32.xlu0 %v652, 88
        %v834 = vpop.permute.xlu0 %833
        %v836 = vsel %vm659, %v832, 0
        %v839 = vsel %vm724, %v834, 0
        %841 = vmatprep.subr.bf16.mxu0 0
        %842 = vmatpush1.bf16.msra.mxu0 %v839
        %843 = vmatprep.subr.bf16.mxu0 0
        %844 = vmatpush1.bf16.msra.mxu0 0
        %845 = vmatprep.subr.bf16.mxu0 0
        %846 = vmatpush1.bf16.msra.mxu0 0
        %847 = vmatprep.subr.bf16.mxu0 0
        %848 = vmatpush1.bf16.msra.mxu0 0
        %849 = vmatprep.subr.bf16.mxu0 0
        %850 = vmatpush1.bf16.msra.mxu0 0
        %851 = vmatprep.subr.bf16.mxu0 0
        %852 = vmatpush1.bf16.msra.mxu0 0
        %853 = vmatprep.subr.bf16.mxu0 0
        %854 = vmatpush1.bf16.msra.mxu0 0
        %855 = vmatprep.subr.bf16.mxu0 0
        %856 = vmatpush1.bf16.msra.mxu0 0
        %857 = vmatprep.subr.bf16.mxu0 0
        %858 = vmatpush1.bf16.msra.mxu0 0
        %859 = vmatprep.subr.bf16.mxu0 0
        %860 = vmatpush1.bf16.msra.mxu0 0
        %861 = vmatprep.subr.bf16.mxu0 0
        %862 = vmatpush1.bf16.msra.mxu0 0
        %863 = vmatprep.subr.bf16.mxu0 0
        %864 = vmatpush1.bf16.msra.mxu0 0
        %865 = vmatprep.subr.bf16.mxu0 0
        %866 = vmatpush1.bf16.msra.mxu0 0
        %867 = vmatprep.subr.bf16.mxu0 0
        %868 = vmatpush1.bf16.msra.mxu0 0
        %869 = vmatprep.subr.bf16.mxu0 0
        %870 = vmatpush1.bf16.msra.mxu0 0
        %871 = vmatprep.subr.bf16.mxu0 0
        %872 = vmatpush1.bf16.msra.mxu0 0
        %873 = vmatprep.mubr.bf16.mxu0 0
        %874 = vmatmul.mubr.bf16.gmra.mrb[0].mxu0 %v836
        %v875 = vpop.f32.mrb[0].mxu0
        %v876 = vadd.f32 0.0, %v875
        %v877 = vpop.f32.mrb[0].mxu0
        %v878 = vpop.f32.mrb[0].mxu0
        %v879 = vpop.f32.mrb[0].mxu0
        %880 = vdwg.mxu0
        %v881 = vpack.c.bf16 %v876, %v876
        %v882 = vld [vmem:[#allocation10 + $0x4] sm:$0xf]
        %v884 = vsel %vm659, %v881, 0
        %v887 = vsel %vm724, %v882, 0
        %889 = vmatprep.subr.bf16.mxu0 0
        %890 = vmatpush1.bf16.msra.mxu0 %v887
        %891 = vmatprep.subr.bf16.mxu0 0
        %892 = vmatpush1.bf16.msra.mxu0 0
        %893 = vmatprep.subr.bf16.mxu0 0
        %894 = vmatpush1.bf16.msra.mxu0 0
        %895 = vmatprep.subr.bf16.mxu0 0
        %896 = vmatpush1.bf16.msra.mxu0 0
        %897 = vmatprep.subr.bf16.mxu0 0
        %898 = vmatpush1.bf16.msra.mxu0 0
        %899 = vmatprep.subr.bf16.mxu0 0
        %900 = vmatpush1.bf16.msra.mxu0 0
        %901 = vmatprep.subr.bf16.mxu0 0
        %902 = vmatpush1.bf16.msra.mxu0 0
        %903 = vmatprep.subr.bf16.mxu0 0
        %904 = vmatpush1.bf16.msra.mxu0 0
        %905 = vmatprep.subr.bf16.mxu0 0
        %906 = vmatpush1.bf16.msra.mxu0 0
        %907 = vmatprep.subr.bf16.mxu0 0
        %908 = vmatpush1.bf16.msra.mxu0 0
        %909 = vmatprep.subr.bf16.mxu0 0
        %910 = vmatpush1.bf16.msra.mxu0 0
        %911 = vmatprep.subr.bf16.mxu0 0
        %912 = vmatpush1.bf16.msra.mxu0 0
        %913 = vmatprep.subr.bf16.mxu0 0
        %914 = vmatpush1.bf16.msra.mxu0 0
        %915 = vmatprep.subr.bf16.mxu0 0
        %916 = vmatpush1.bf16.msra.mxu0 0
        %917 = vmatprep.subr.bf16.mxu0 0
        %918 = vmatpush1.bf16.msra.mxu0 0
        %919 = vmatprep.subr.bf16.mxu0 0
        %920 = vmatpush1.bf16.msra.mxu0 0
        %921 = vmatprep.mubr.bf16.mxu0 0
        %922 = vmatmul.mubr.bf16.gmra.mrb[0].mxu0 %v884
        %v923 = vpop.f32.mrb[0].mxu0
        %v924 = vadd.f32 0.0, %v923
        %v925 = vpop.f32.mrb[0].mxu0
        %v926 = vpop.f32.mrb[0].mxu0
        %v927 = vpop.f32.mrb[0].mxu0
        %928 = vdwg.mxu0
        %v930 = vsel %vm659, %v768, 0
        %v933 = vsel %vm724, %v769, 0
        %935 = vmatprep.subr.bf16.mxu0 0
        %936 = vmatpush1.bf16.msra.mxu0 %v933
        %937 = vmatprep.subr.bf16.mxu0 0
        %938 = vmatpush1.bf16.msra.mxu0 0
        %939 = vmatprep.subr.bf16.mxu0 0
        %940 = vmatpush1.bf16.msra.mxu0 0
        %941 = vmatprep.subr.bf16.mxu0 0
        %942 = vmatpush1.bf16.msra.mxu0 0
        %943 = vmatprep.subr.bf16.mxu0 0
        %944 = vmatpush1.bf16.msra.mxu0 0
        %945 = vmatprep.subr.bf16.mxu0 0
        %946 = vmatpush1.bf16.msra.mxu0 0
        %947 = vmatprep.subr.bf16.mxu0 0
        %948 = vmatpush1.bf16.msra.mxu0 0
        %949 = vmatprep.subr.bf16.mxu0 0
        %950 = vmatpush1.bf16.msra.mxu0 0
        %951 = vmatprep.subr.bf16.mxu0 0
        %952 = vmatpush1.bf16.msra.mxu0 0
        %953 = vmatprep.subr.bf16.mxu0 0
        %954 = vmatpush1.bf16.msra.mxu0 0
        %955 = vmatprep.subr.bf16.mxu0 0
        %956 = vmatpush1.bf16.msra.mxu0 0
        %957 = vmatprep.subr.bf16.mxu0 0
        %958 = vmatpush1.bf16.msra.mxu0 0
        %959 = vmatprep.subr.bf16.mxu0 0
        %960 = vmatpush1.bf16.msra.mxu0 0
        %961 = vmatprep.subr.bf16.mxu0 0
        %962 = vmatpush1.bf16.msra.mxu0 0
        %963 = vmatprep.subr.bf16.mxu0 0
        %964 = vmatpush1.bf16.msra.mxu0 0
        %965 = vmatprep.subr.bf16.mxu0 0
        %966 = vmatpush1.bf16.msra.mxu0 0
        %967 = vmatprep.mubr.bf16.mxu0 0
        %968 = vmatmul.mubr.bf16.gmra.mrb[0].mxu0 %v930
        %v969 = vpop.f32.mrb[0].mxu0
        %v970 = vadd.f32 %v924, %v969
        %v971 = vpop.f32.mrb[0].mxu0
        %v972 = vpop.f32.mrb[0].mxu0
        %v973 = vpop.f32.mrb[0].mxu0
        %974 = vdwg.mxu0
        %975 = vrot.lane.b32.xlu0 %v651, 112
        %v976 = vpop.permute.xlu0 %975
        %977 = vrot.lane.b32.xlu0 %v652, 112
        %v978 = vpop.permute.xlu0 %977
        %v980 = vsel %vm659, %v976, 0
        %v983 = vsel %vm659, %v978, 0
        %985 = vmatprep.subr.bf16.mxu0 0
        %986 = vmatpush1.bf16.xpose.msra.mxu0 %v983
        %987 = vmatprep.subr.bf16.mxu0 0
        %988 = vmatpush1.bf16.xpose.msra.mxu0 0
        %989 = vmatprep.subr.bf16.mxu0 0
        %990 = vmatpush1.bf16.xpose.msra.mxu0 0
        %991 = vmatprep.subr.bf16.mxu0 0
        %992 = vmatpush1.bf16.xpose.msra.mxu0 0
        %993 = vmatprep.subr.bf16.mxu0 0
        %994 = vmatpush1.bf16.xpose.msra.mxu0 0
        %995 = vmatprep.subr.bf16.mxu0 0
        %996 = vmatpush1.bf16.xpose.msra.mxu0 0
        %997 = vmatprep.subr.bf16.mxu0 0
        %998 = vmatpush1.bf16.xpose.msra.mxu0 0
        %999 = vmatprep.subr.bf16.mxu0 0
        %1000 = vmatpush1.bf16.xpose.msra.mxu0 0
        %1001 = vmatprep.subr.bf16.mxu0 0
        %1002 = vmatpush1.bf16.xpose.msra.mxu0 0
        %1003 = vmatprep.subr.bf16.mxu0 0
        %1004 = vmatpush1.bf16.xpose.msra.mxu0 0
        %1005 = vmatprep.subr.bf16.mxu0 0
        %1006 = vmatpush1.bf16.xpose.msra.mxu0 0
        %1007 = vmatprep.subr.bf16.mxu0 0
        %1008 = vmatpush1.bf16.xpose.msra.mxu0 0
        %1009 = vmatprep.subr.bf16.mxu0 0
        %1010 = vmatpush1.bf16.xpose.msra.mxu0 0
        %1011 = vmatprep.subr.bf16.mxu0 0
        %1012 = vmatpush1.bf16.xpose.msra.mxu0 0
        %1013 = vmatprep.subr.bf16.mxu0 0
        %1014 = vmatpush1.bf16.xpose.msra.mxu0 0
        %1015 = vmatprep.subr.bf16.mxu0 0
        %1016 = vmatpush1.bf16.xpose.msra.mxu0 0
        %1017 = vmatprep.mubr.bf16.mxu0 0
        %1018 = vmatmul.mubr.bf16.gmra.mrb[0].mxu0 %v980
        %v1019 = vpop.f32.mrb[0].mxu0
        %v1020 = vadd.f32 %v657, %v1019
        %v1021 = vpop.f32.mrb[0].mxu0
        %v1022 = vpop.f32.mrb[0].mxu0
        %v1023 = vpop.f32.mrb[0].mxu0
        %1024 = vdwg.mxu0
        %v1025 = vsel %vm659, %v1020, -inf
        %1026 = vmax.xlane.f32.xlu0 %v1025
        %v1027 = vpop.xlane.xlu0 %1026
        %v1028 = vsub.f32 %v1020, %v1027
        %v1029 = vmul.f32 %v1028, 1.442695
        %v1030 = vpow.pop %v1029
        %v1031 = vsel %vm659, %v1030, 0.0
        %1032 = vadd.xlane.f32.xlu0 %v1031
        %v1033 = vpop.xlane.xlu0 %1032
        %v1034 = vrcp.pop %v1033
        %v1035 = vmul.f32 %v1030, %v1034
        %v1036 = vpack.c.bf16 %v1035, %v1035
        %1037 = vrot.lane.b32.xlu0 %v652, 80
        %v1038 = vpop.permute.xlu0 %1037
        %v1040 = vsel %vm659, %v1036, 0
        %v1043 = vsel %vm724, %v1038, 0
        %1045 = vmatprep.subr.bf16.mxu0 0
        %1046 = vmatpush1.bf16.msra.mxu0 %v1043
        %1047 = vmatprep.subr.bf16.mxu0 0
        %1048 = vmatpush1.bf16.msra.mxu0 0
        %1049 = vmatprep.subr.bf16.mxu0 0
        %1050 = vmatpush1.bf16.msra.mxu0 0
        %1051 = vmatprep.subr.bf16.mxu0 0
        %1052 = vmatpush1.bf16.msra.mxu0 0
        %1053 = vmatprep.subr.bf16.mxu0 0
        %1054 = vmatpush1.bf16.msra.mxu0 0
        %1055 = vmatprep.subr.bf16.mxu0 0
        %1056 = vmatpush1.bf16.msra.mxu0 0
        %1057 = vmatprep.subr.bf16.mxu0 0
        %1058 = vmatpush1.bf16.msra.mxu0 0
        %1059 = vmatprep.subr.bf16.mxu0 0
        %1060 = vmatpush1.bf16.msra.mxu0 0
        %1061 = vmatprep.subr.bf16.mxu0 0
        %1062 = vmatpush1.bf16.msra.mxu0 0
        %1063 = vmatprep.subr.bf16.mxu0 0
        %1064 = vmatpush1.bf16.msra.mxu0 0
        %1065 = vmatprep.subr.bf16.mxu0 0
        %1066 = vmatpush1.bf16.msra.mxu0 0
        %1067 = vmatprep.subr.bf16.mxu0 0
        %1068 = vmatpush1.bf16.msra.mxu0 0
        %1069 = vmatprep.subr.bf16.mxu0 0
        %1070 = vmatpush1.bf16.msra.mxu0 0
        %1071 = vmatprep.subr.bf16.mxu0 0
        %1072 = vmatpush1.bf16.msra.mxu0 0
        %1073 = vmatprep.subr.bf16.mxu0 0
        %1074 = vmatpush1.bf16.msra.mxu0 0
        %1075 = vmatprep.subr.bf16.mxu0 0
        %1076 = vmatpush1.bf16.msra.mxu0 0
        %1077 = vmatprep.mubr.bf16.mxu0 0
        %1078 = vmatmul.mubr.bf16.gmra.mrb[0].mxu0 %v1040
        %v1079 = vpop.f32.mrb[0].mxu0
        %v1080 = vadd.f32 0.0, %v1079
        %v1081 = vpop.f32.mrb[0].mxu0
        %v1082 = vpop.f32.mrb[0].mxu0
        %v1083 = vpop.f32.mrb[0].mxu0
        %1084 = vdwg.mxu0
        %v1085 = vpack.c.bf16 %v1080, %v1080
        %v1086 = vld [vmem:[#allocation10 + $0x8] sm:$0xf]
        %v1088 = vsel %vm659, %v1085, 0
        %v1091 = vsel %vm724, %v1086, 0
        %1093 = vmatprep.subr.bf16.mxu0 0
        %1094 = vmatpush1.bf16.msra.mxu0 %v1091
        %1095 = vmatprep.subr.bf16.mxu0 0
        %1096 = vmatpush1.bf16.msra.mxu0 0
        %1097 = vmatprep.subr.bf16.mxu0 0
        %1098 = vmatpush1.bf16.msra.mxu0 0
        %1099 = vmatprep.subr.bf16.mxu0 0
        %1100 = vmatpush1.bf16.msra.mxu0 0
        %1101 = vmatprep.subr.bf16.mxu0 0
        %1102 = vmatpush1.bf16.msra.mxu0 0
        %1103 = vmatprep.subr.bf16.mxu0 0
        %1104 = vmatpush1.bf16.msra.mxu0 0
        %1105 = vmatprep.subr.bf16.mxu0 0
        %1106 = vmatpush1.bf16.msra.mxu0 0
        %1107 = vmatprep.subr.bf16.mxu0 0
        %1108 = vmatpush1.bf16.msra.mxu0 0
        %1109 = vmatprep.subr.bf16.mxu0 0
        %1110 = vmatpush1.bf16.msra.mxu0 0
        %1111 = vmatprep.subr.bf16.mxu0 0
        %1112 = vmatpush1.bf16.msra.mxu0 0
        %1113 = vmatprep.subr.bf16.mxu0 0
        %1114 = vmatpush1.bf16.msra.mxu0 0
        %1115 = vmatprep.subr.bf16.mxu0 0
        %1116 = vmatpush1.bf16.msra.mxu0 0
        %1117 = vmatprep.subr.bf16.mxu0 0
        %1118 = vmatpush1.bf16.msra.mxu0 0
        %1119 = vmatprep.subr.bf16.mxu0 0
        %1120 = vmatpush1.bf16.msra.mxu0 0
        %1121 = vmatprep.subr.bf16.mxu0 0
        %1122 = vmatpush1.bf16.msra.mxu0 0
        %1123 = vmatprep.subr.bf16.mxu0 0
        %1124 = vmatpush1.bf16.msra.mxu0 0
        %1125 = vmatprep.mubr.bf16.mxu0 0
        %1126 = vmatmul.mubr.bf16.gmra.mrb[0].mxu0 %v1088
        %v1127 = vpop.f32.mrb[0].mxu0
        %v1128 = vadd.f32 0.0, %v1127
        %v1129 = vpop.f32.mrb[0].mxu0
        %v1130 = vpop.f32.mrb[0].mxu0
        %v1131 = vpop.f32.mrb[0].mxu0
        %1132 = vdwg.mxu0
        %v1133 = vadd.f32 %v970, %v1128
        %1134 = vrot.lane.b32.xlu0 %v651, 104
        %v1135 = vpop.permute.xlu0 %1134
        %1136 = vrot.lane.b32.xlu0 %v652, 104
        %v1137 = vpop.permute.xlu0 %1136
        %v1139 = vsel %vm659, %v1135, 0
        %v1142 = vsel %vm659, %v1137, 0
        %1144 = vmatprep.subr.bf16.mxu0 0
        %1145 = vmatpush1.bf16.xpose.msra.mxu0 %v1142
        %1146 = vmatprep.subr.bf16.mxu0 0
        %1147 = vmatpush1.bf16.xpose.msra.mxu0 0
        %1148 = vmatprep.subr.bf16.mxu0 0
        %1149 = vmatpush1.bf16.xpose.msra.mxu0 0
        %1150 = vmatprep.subr.bf16.mxu0 0
        %1151 = vmatpush1.bf16.xpose.msra.mxu0 0
        %1152 = vmatprep.subr.bf16.mxu0 0
        %1153 = vmatpush1.bf16.xpose.msra.mxu0 0
        %1154 = vmatprep.subr.bf16.mxu0 0
        %1155 = vmatpush1.bf16.xpose.msra.mxu0 0
        %1156 = vmatprep.subr.bf16.mxu0 0
        %1157 = vmatpush1.bf16.xpose.msra.mxu0 0
        %1158 = vmatprep.subr.bf16.mxu0 0
        %1159 = vmatpush1.bf16.xpose.msra.mxu0 0
        %1160 = vmatprep.subr.bf16.mxu0 0
        %1161 = vmatpush1.bf16.xpose.msra.mxu0 0
        %1162 = vmatprep.subr.bf16.mxu0 0
        %1163 = vmatpush1.bf16.xpose.msra.mxu0 0
        %1164 = vmatprep.subr.bf16.mxu0 0
        %1165 = vmatpush1.bf16.xpose.msra.mxu0 0
        %1166 = vmatprep.subr.bf16.mxu0 0
        %1167 = vmatpush1.bf16.xpose.msra.mxu0 0
        %1168 = vmatprep.subr.bf16.mxu0 0
        %1169 = vmatpush1.bf16.xpose.msra.mxu0 0
        %1170 = vmatprep.subr.bf16.mxu0 0
        %1171 = vmatpush1.bf16.xpose.msra.mxu0 0
        %1172 = vmatprep.subr.bf16.mxu0 0
        %1173 = vmatpush1.bf16.xpose.msra.mxu0 0
        %1174 = vmatprep.subr.bf16.mxu0 0
        %1175 = vmatpush1.bf16.xpose.msra.mxu0 0
        %1176 = vmatprep.mubr.bf16.mxu0 0
        %1177 = vmatmul.mubr.bf16.gmra.mrb[0].mxu0 %v1139
        %v1178 = vpop.f32.mrb[0].mxu0
        %v1179 = vadd.f32 %v657, %v1178
        %v1180 = vpop.f32.mrb[0].mxu0
        %v1181 = vpop.f32.mrb[0].mxu0
        %v1182 = vpop.f32.mrb[0].mxu0
        %1183 = vdwg.mxu0
        %v1184 = vsel %vm659, %v1179, -inf
        %1185 = vmax.xlane.f32.xlu0 %v1184
        %v1186 = vpop.xlane.xlu0 %1185
        %v1187 = vsub.f32 %v1179, %v1186
        %v1188 = vmul.f32 %v1187, 1.442695
        %v1189 = vpow.pop %v1188
        %v1190 = vsel %vm659, %v1189, 0.0
        %1191 = vadd.xlane.f32.xlu0 %v1190
        %v1192 = vpop.xlane.xlu0 %1191
        %v1193 = vrcp.pop %v1192
        %v1194 = vmul.f32 %v1189, %v1193
        %v1195 = vpack.c.bf16 %v1194, %v1194
        %1196 = vrot.lane.b32.xlu0 %v652, 72
        %v1197 = vpop.permute.xlu0 %1196
        %v1199 = vsel %vm659, %v1195, 0
        %v1202 = vsel %vm724, %v1197, 0
        %1204 = vmatprep.subr.bf16.mxu0 0
        %1205 = vmatpush1.bf16.msra.mxu0 %v1202
        %1206 = vmatprep.subr.bf16.mxu0 0
        %1207 = vmatpush1.bf16.msra.mxu0 0
        %1208 = vmatprep.subr.bf16.mxu0 0
        %1209 = vmatpush1.bf16.msra.mxu0 0
        %1210 = vmatprep.subr.bf16.mxu0 0
        %1211 = vmatpush1.bf16.msra.mxu0 0
        %1212 = vmatprep.subr.bf16.mxu0 0
        %1213 = vmatpush1.bf16.msra.mxu0 0
        %1214 = vmatprep.subr.bf16.mxu0 0
        %1215 = vmatpush1.bf16.msra.mxu0 0
        %1216 = vmatprep.subr.bf16.mxu0 0
        %1217 = vmatpush1.bf16.msra.mxu0 0
        %1218 = vmatprep.subr.bf16.mxu0 0
        %1219 = vmatpush1.bf16.msra.mxu0 0
        %1220 = vmatprep.subr.bf16.mxu0 0
        %1221 = vmatpush1.bf16.msra.mxu0 0
        %1222 = vmatprep.subr.bf16.mxu0 0
        %1223 = vmatpush1.bf16.msra.mxu0 0
        %1224 = vmatprep.subr.bf16.mxu0 0
        %1225 = vmatpush1.bf16.msra.mxu0 0
        %1226 = vmatprep.subr.bf16.mxu0 0
        %1227 = vmatpush1.bf16.msra.mxu0 0
        %1228 = vmatprep.subr.bf16.mxu0 0
        %1229 = vmatpush1.bf16.msra.mxu0 0
        %1230 = vmatprep.subr.bf16.mxu0 0
        %1231 = vmatpush1.bf16.msra.mxu0 0
        %1232 = vmatprep.subr.bf16.mxu0 0
        %1233 = vmatpush1.bf16.msra.mxu0 0
        %1234 = vmatprep.subr.bf16.mxu0 0
        %1235 = vmatpush1.bf16.msra.mxu0 0
        %1236 = vmatprep.mubr.bf16.mxu0 0
        %1237 = vmatmul.mubr.bf16.gmra.mrb[0].mxu0 %v1199
        %v1238 = vpop.f32.mrb[0].mxu0
        %v1239 = vadd.f32 0.0, %v1238
        %v1240 = vpop.f32.mrb[0].mxu0
        %v1241 = vpop.f32.mrb[0].mxu0
        %v1242 = vpop.f32.mrb[0].mxu0
        %1243 = vdwg.mxu0
        %v1244 = vpack.c.bf16 %v1239, %v1239
        %v1245 = vld [vmem:[#allocation10 + $0xc] sm:$0xf]
        %v1247 = vsel %vm659, %v1244, 0
        %v1250 = vsel %vm724, %v1245, 0
        %1252 = vmatprep.subr.bf16.mxu0 0
        %1253 = vmatpush1.bf16.msra.mxu0 %v1250
        %1254 = vmatprep.subr.bf16.mxu0 0
        %1255 = vmatpush1.bf16.msra.mxu0 0
        %1256 = vmatprep.subr.bf16.mxu0 0
        %1257 = vmatpush1.bf16.msra.mxu0 0
        %1258 = vmatprep.subr.bf16.mxu0 0
        %1259 = vmatpush1.bf16.msra.mxu0 0
        %1260 = vmatprep.subr.bf16.mxu0 0
        %1261 = vmatpush1.bf16.msra.mxu0 0
        %1262 = vmatprep.subr.bf16.mxu0 0
        %1263 = vmatpush1.bf16.msra.mxu0 0
        %1264 = vmatprep.subr.bf16.mxu0 0
        %1265 = vmatpush1.bf16.msra.mxu0 0
        %1266 = vmatprep.subr.bf16.mxu0 0
        %1267 = vmatpush1.bf16.msra.mxu0 0
        %1268 = vmatprep.subr.bf16.mxu0 0
        %1269 = vmatpush1.bf16.msra.mxu0 0
        %1270 = vmatprep.subr.bf16.mxu0 0
        %1271 = vmatpush1.bf16.msra.mxu0 0
        %1272 = vmatprep.subr.bf16.mxu0 0
        %1273 = vmatpush1.bf16.msra.mxu0 0
        %1274 = vmatprep.subr.bf16.mxu0 0
        %1275 = vmatpush1.bf16.msra.mxu0 0
        %1276 = vmatprep.subr.bf16.mxu0 0
        %1277 = vmatpush1.bf16.msra.mxu0 0
        %1278 = vmatprep.subr.bf16.mxu0 0
        %1279 = vmatpush1.bf16.msra.mxu0 0
        %1280 = vmatprep.subr.bf16.mxu0 0
        %1281 = vmatpush1.bf16.msra.mxu0 0
        %1282 = vmatprep.subr.bf16.mxu0 0
        %1283 = vmatpush1.bf16.msra.mxu0 0
        %1284 = vmatprep.mubr.bf16.mxu0 0
        %1285 = vmatmul.mubr.bf16.gmra.mrb[0].mxu0 %v1247
        %v1286 = vpop.f32.mrb[0].mxu0
        %v1287 = vadd.f32 0.0, %v1286
        %v1288 = vpop.f32.mrb[0].mxu0
        %v1289 = vpop.f32.mrb[0].mxu0
        %v1290 = vpop.f32.mrb[0].mxu0
        %1291 = vdwg.mxu0
        %v1292 = vadd.f32 %v1133, %v1287
        %v1293 = vld [vmem:[%s8] sm:$0x1]
        %v1295 = vlaneseq
        %v1296 = vshrl.u32 %v1295, 7
        %v1297 = vsub.s32 0, %v1296
        %v1298 = vrot.slane %v1293, %v1297
        %v1300 = vadd.f32 %v1292, %v1298
        %v1301 = vadd.f32 %v1300, %v512
        %v1302 = vsel %vm540, %v1301, 0.0
        %1303 = vadd.xlane.f32.xlu0 %v1302
        %v1304 = vpop.xlane.xlu0 %1303
        %v1305 = vrcp.pop 32.0
        %v1306 = vmul.f32 %v1304, %v1305
        %v1307 = vsub.f32 %v1301, %v1306
        %v1308 = vmul.f32 %v1307, %v1307
        %v1309 = vsel %vm540, %v1308, 0.0
        %1310 = vadd.xlane.f32.xlu0 %v1309
        %v1311 = vpop.xlane.xlu0 %1310
        %v1312 = vmul.f32 %v1311, %v1305
        %v1313 = vadd.f32 %v1312, 1e-12
        %v1314 = vrsqrt.pop %v1313
        %v1315 = vmul.f32 %v1307, %v1314
        %v1316 = vld [vmem:[%s9] sm:$0x1]
        %v1318 = vlaneseq
        %v1319 = vshrl.u32 %v1318, 7
        %v1320 = vsub.s32 0, %v1319
        %v1321 = vrot.slane %v1316, %v1320
        %v1323 = vmul.f32 %v1315, %v1321
        %v1324 = vld [vmem:[%s10] sm:$0x1]
        %v1326 = vlaneseq
        %v1327 = vshrl.u32 %v1326, 7
        %v1328 = vsub.s32 0, %v1327
        %v1329 = vrot.slane %v1324, %v1328
        %v1331 = vadd.f32 %v1323, %v1329
        %1332 = vst.msk [vmem:[%s507] sm:$0xff] %vm540, %v1331
        %s1333 = sand.u32 %s302, 1
        %s1334 = scalar_lea.sflag [#allocation4], %s1333
        %s1335 = sand.u32 %s302, 1
        %s1336 = smul.addr %s1335, 8
        %s1337 = scalar_lea.vmem [#allocation11], %s1336
        // Predicated region
        $region85: #{tpu_custom_call.1} parent=63 // pred_check
          %p1338 = pneg %p312
        $region86: #{tpu_custom_call.1} parent=63 // pred_check_branch
          %1340 = sbr.rel (%p1338) target = $region88
        $region87: #{tpu_custom_call.1} parent=63 // pred_region
          %s1342 = ssub.s32 128, 128
          %1343 = vsyncadd %s1334, %s1342
          %s1344 = sadd.s32 %s37, %s36
          %s1345 = smul.addr %s1344, 128
          %s1346 = scalar_lea.hbm %s11, %s1345
          %s1348 = sshll.u32 %s1337, 4
          %s1349 = int_to_ptr.vmem [resolvable:$true] %s1348
          %1351 = dma.vmem_to_hbm [thread:$0]  %s1349, 128, %s1346, %s1334
        $region88: #{tpu_custom_call.1} parent=63 // pred_fallthru
          _
      $region64: #{tpu_custom_call.1} parent=5 // pred_fallthru
        _
      %p1352 = scmp.le.s32.totalorder 2, %s27
      // Predicated region
      $region89: #{tpu_custom_call.1} parent=5 // pred_check
        %p1353 = pneg %p1352
      $region90: #{tpu_custom_call.1} parent=5 // pred_check_branch
        %1355 = sbr.rel (%p1353) target = $region92
      $region91: #{tpu_custom_call.1} parent=5 // pred_region
        %s1356 = ssub.s32 %s27, 2
        // Predicated region
        $region93: #{tpu_custom_call.1} parent=91 // pred_check
          %p1357 = pneg %p318
        $region94: #{tpu_custom_call.1} parent=91 // pred_check_branch
          %1359 = sbr.rel (%p1357) target = $region96
        $region95: #{tpu_custom_call.1} parent=91 // pred_region
          %s1360 = sand.u32 %s303, 1
          %s1361 = scalar_lea.sflag [#allocation4], %s1360
          %s1362 = sand.u32 %s303, 1
          %s1363 = smul.addr %s1362, 8
          %s1364 = scalar_lea.vmem [#allocation11], %s1363
          %1365 = dma.done %s1361, 128
        $region96: #{tpu_custom_call.1} parent=91 // pred_fallthru
          _
      $region92: #{tpu_custom_call.1} parent=5 // pred_fallthru
        _
    $region6: #{tpu_custom_call.1} parent=1 // loop_footer
      %s31 = sadd.s32 1, %s27
    $region7: #{tpu_custom_call.1} parent=1 // loop_footer_branch
      %26 = sbr.rel target = $region3
    $region8: #{tpu_custom_call.1} parent=1 // loop_exit
      _
    %1366 = vsyncpa [#allocation3], 1
    %s1367 = scalar_lea.sflag [#allocation3], 1
    %1368 = vsyncpa %s1367, 1
    %1369 = vsyncpa [#allocation6], 1
    %s1370 = scalar_lea.sflag [#allocation6], 1
    %1371 = vsyncpa %s1370, 1
    %1372 = vsyncpa [#allocation9], 1
    %1373 = vsyncpa [#allocation4], 1
    %s1374 = scalar_lea.sflag [#allocation4], 1
    %1375 = vsyncpa %s1374, 1

</llo_original>
